<compile_context>
chip_gen: v7x
topology: tpu7x:2x2x1
jax: 0.10.0
libtpu: 0.0.40
codegen_flags: <defaults>
</compile_context>

<pallas_src>
import functools

import jax
import jax.numpy as jnp
from jax import lax
from jax.experimental import pallas as pl
from jax.experimental.pallas import tpu as pltpu

_FULL_UNROLL_MAX_STEPS = 64  # fully unroll the time loop in Python up to this length


def _lstm_gates(gates, c_prev, H):
    """PyTorch-ordered (i, f, g, o) gate math on a (B, 4H) f32 pre-activation."""
    sig = jax.nn.sigmoid(gates)   # one full-vreg EUP pass over (B, 4H)
    tnh = jnp.tanh(gates)         # one full-vreg EUP pass over (B, 4H)
    i = sig[:, 0 * H:1 * H]
    f = sig[:, 1 * H:2 * H]
    g = tnh[:, 2 * H:3 * H]
    o = sig[:, 3 * H:4 * H]
    c_new = f * c_prev + i * g
    h_new = o * jnp.tanh(c_new)
    return h_new, c_new


def _encoder_lstm_kernel(x2d_ref, m_ref, wih0_ref, whh0_ref, b0_ref,
                         wih1_ref, whh1_ref, b1_ref, out_ref, pre0_ref):
    """x2d: (S*B, I) f32; m: (S, B, 1) f32; w*: bf16; b*: (1, 4H) f32.

    out: (B, H) f32; pre0 scratch: (S*B, 4H) f32 (layer-0 input projection + b0).
    """
    S, B, _ = m_ref.shape
    H = out_ref.shape[1]
    mm_dtype = whh0_ref.dtype   # bf16 (or f32 if caller disabled the cast)

    # ---- Prologue: layer-0 x-projection for all timesteps as ONE MXU matmul,
    # ---- with b0 folded in. Row t*B + b of pre0 is timestep t, batch row b.
    wih0 = wih0_ref[...]
    pre0_ref[...] = jnp.dot(x2d_ref[...].astype(mm_dtype), wih0,
                            preferred_element_type=jnp.float32) + b0_ref[...]

    # Hoist recurrent weights / pre-broadcast b1 out of the time loop.
    whh0 = whh0_ref[...]
    wih1 = wih1_ref[...]
    whh1 = whh1_ref[...]
    b1b = jnp.broadcast_to(b1_ref[...], (B, 4 * H))   # hoisted: one broadcast total

    def step(t, carry):
        h0, c0, h1, c1, acc = carry
        m_t = m_ref[t]                                                     # (B, 1)

        # Layer-1 recurrent product depends only on step t-1 state: issue it up
        # front so it overlaps layer-0 compute of the same step.
        rec1 = jnp.dot(h1.astype(mm_dtype), whh1, preferred_element_type=jnp.float32)

        # Layer 0: precomputed x-projection (+b0) plus recurrent projection.
        if isinstance(t, int):
            start = t * B                                   # static (unrolled path)
        else:
            start = pl.multiple_of(t * B, B)                # dynamic (fori path)
        pre0_t = pre0_ref[pl.ds(start, B), :]                              # (B, 4H)
        gates0 = pre0_t + jnp.dot(h0.astype(mm_dtype), whh0,
                                  preferred_element_type=jnp.float32)
        h0, c0 = _lstm_gates(gates0, c0, H)

        # Layer 1: two accumulating matmuls (no concat).
        gates1 = rec1 + jnp.dot(h0.astype(mm_dtype), wih1,
                                preferred_element_type=jnp.float32) + b1b
        h1, c1 = _lstm_gates(gates1, c1, H)

        acc = acc + h1 * m_t
        return (h0, c0, h1, c1, acc)

    z = jnp.zeros((B, H), jnp.float32)
    carry = (z, z, z, z, z)
    if S <= _FULL_UNROLL_MAX_STEPS:
        # Fully unrolled straight-line recurrence (static indices, max scheduler
        # visibility for cross-step / cross-layer MXU overlap).
        for t in range(S):
            carry = step(t, carry)
    else:
        carry = lax.fori_loop(0, S, step, carry, unroll=8)
    acc = carry[4]

    # Denominator does not depend on the recurrence: single epilogue reduce.
    denom = jnp.sum(m_ref[...], axis=0)                                    # (B, 1)
    out_ref[...] = acc / denom


@functools.partial(jax.jit, static_argnames=("hidden_size", "matmul_dtype"))
def encoder_lstm_for_road_emb(road_emb, input_mask, params, hidden_size,
                              matmul_dtype=jnp.bfloat16):
    """road_emb: (B, S, I) f32; input_mask: (B, S) f32 -> (B, H) f32."""
    B, S, I = road_emb.shape
    H = hidden_size
    wih0, whh0, b0, wih1, whh1, b1 = params

    # MXU operands in bf16 (native single-pass on v5e/v6e/v7x); state math stays f32.
    wih0 = wih0.astype(matmul_dtype)
    whh0 = whh0.astype(matmul_dtype)
    wih1 = wih1.astype(matmul_dtype)
    whh1 = whh1.astype(matmul_dtype)

    # Time-major layout; x flattened to (S*B, I) for the one-shot prologue matmul.
    x_tm = jnp.transpose(road_emb, (1, 0, 2)).astype(jnp.float32)          # (S, B, I)
    x_2d = x_tm.reshape(S * B, I)                                          # row t*B + b
    m_tm = jnp.transpose(input_mask, (1, 0))[:, :, None].astype(jnp.float32)  # (S, B, 1)

    vmem = pl.BlockSpec(memory_space=pltpu.MemorySpace.VMEM)
    return pl.pallas_call(
        _encoder_lstm_kernel,
        out_shape=jax.ShapeDtypeStruct((B, H), jnp.float32),
        in_specs=[vmem] * 8,
        out_specs=vmem,
        scratch_shapes=[pltpu.VMEM((S * B, 4 * H), jnp.float32)],
    )(x_2d, m_tm, wih0, whh0, b0.reshape(1, 4 * H), wih1, whh1, b1.reshape(1, 4 * H))


def init_params(key, input_size, hidden_size):
    """Deterministic LSTM params, uniform(-1/sqrt(H), 1/sqrt(H)) like PyTorch."""
    H = hidden_size
    k = 1.0 / jnp.sqrt(jnp.float32(H))
    keys = jax.random.split(key, 8)
    u = lambda kk, shape: jax.random.uniform(kk, shape, jnp.float32, -k, k)
    # PyTorch layout is (4H, Din); stored transposed (Din, 4H) for x @ W.
    wih0 = u(keys[0], (input_size, 4 * H))
    whh0 = u(keys[1], (H, 4 * H))
    b0 = u(keys[2], (1, 4 * H)) + u(keys[3], (1, 4 * H))                   # b_ih + b_hh
    wih1 = u(keys[4], (H, 4 * H))
    whh1 = u(keys[5], (H, 4 * H))
    b1 = u(keys[6], (1, 4 * H)) + u(keys[7], (1, 4 * H))
    return (wih0, whh0, b0, wih1, whh1, b1)


# ------------------------- pure-JAX reference -------------------------

def _lstm_cell_ref(x, h, c, w_ih, w_hh, b, mm_dtype):
    H = h.shape[-1]
    gates = (jnp.dot(x.astype(mm_dtype), w_ih.astype(mm_dtype),
                     preferred_element_type=jnp.float32)
             + jnp.dot(h.astype(mm_dtype), w_hh.astype(mm_dtype),
                       preferred_element_type=jnp.float32)
             + b)
    i = jax.nn.sigmoid(gates[:, 0 * H:1 * H])
    f = jax.nn.sigmoid(gates[:, 1 * H:2 * H])
    g = jnp.tanh(gates[:, 2 * H:3 * H])
    o = jax.nn.sigmoid(gates[:, 3 * H:4 * H])
    c_new = f * c + i * g
    return o * jnp.tanh(c_new), c_new


def reference_forward(road_emb, input_mask, params, hidden_size,
                      matmul_dtype=jnp.float32):
    wih0, whh0, b0, wih1, whh1, b1 = params
    H = hidden_size
    x_tm = jnp.transpose(road_emb, (1, 0, 2)).astype(jnp.float32)

    def step(carry, x_t):
        h0, c0, h1, c1 = carry
        h0, c0 = _lstm_cell_ref(x_t, h0, c0, wih0, whh0, b0, matmul_dtype)
        h1, c1 = _lstm_cell_ref(h0, h1, c1, wih1, whh1, b1, matmul_dtype)
        return (h0, c0, h1, c1), h1

    B = road_emb.shape[0]
    z = jnp.zeros((B, H), jnp.float32)
    _, outs = jax.lax.scan(step, (z, z, z, z), x_tm)                       # (S, B, H)
    outs = jnp.transpose(outs, (1, 0, 2))                                  # (B, S, H)
    m = input_mask.astype(jnp.float32)[:, :, None]
    return jnp.sum(outs * m, axis=1) / jnp.sum(m, axis=1)


if __name__ == "__main__":
    B, S, I, H = 8, 8, 16, 32

    key = jax.random.PRNGKey(0)
    k_x, k_m, k_p = jax.random.split(key, 3)

    road_emb = jax.random.normal(k_x, (B, S, I), jnp.float32)
    input_mask = (jax.random.uniform(k_m, (B, S)) > 0.3).astype(jnp.float32)
    input_mask = input_mask.at[:, 0].set(1.0)   # avoid all-zero rows (div by zero)

    params = init_params(k_p, I, H)

    out = encoder_lstm_for_road_emb(road_emb, input_mask, params, H)
    out = jax.block_until_ready(out)
    assert out.shape == (B, H)

    # Structure check: reference with the SAME bf16 matmul operands (tight tol).
    ref_bf16 = reference_forward(road_emb, input_mask, params, H,
                                 matmul_dtype=jnp.bfloat16)
    assert jnp.allclose(out, ref_bf16, rtol=5e-3, atol=5e-3), \
        "mismatch vs bf16-matmul reference"

    # Numerics check: full-f32 reference (bf16 MXU operands -> looser tolerance).
    ref_f32 = reference_forward(road_emb, input_mask, params, H,
                                matmul_dtype=jnp.float32)
    assert jnp.allclose(out, ref_f32, rtol=3e-2, atol=3e-2), \
        "mismatch vs f32 reference"

    print("KERNEL_OK")
</pallas_src>

<mosaic_0001>
module attributes {stable_mosaic.version = 11 : i64} {
  func.func @_encoder_lstm_kernel(%arg0: memref<64x16xf32, #tpu.memory_space<vmem>>, %arg1: memref<8x8x1xf32, #tpu.memory_space<vmem>>, %arg2: memref<16x128xbf16, #tpu.memory_space<vmem>>, %arg3: memref<32x128xbf16, #tpu.memory_space<vmem>>, %arg4: memref<1x128xf32, #tpu.memory_space<vmem>>, %arg5: memref<32x128xbf16, #tpu.memory_space<vmem>>, %arg6: memref<32x128xbf16, #tpu.memory_space<vmem>>, %arg7: memref<1x128xf32, #tpu.memory_space<vmem>>, %arg8: memref<8x32xf32, #tpu.memory_space<vmem>>, %arg9: memref<64x128xf32, #tpu.memory_space<vmem>>) attributes {dimension_semantics = [], scalar_prefetch = 0 : i64, scratch_operands = 1 : i64, tpu.core_type = #tpu.core_type<tc>} {
    %c0 = arith.constant 0 : index
    %c0_0 = arith.constant 0 : index
    %0 = vector.load %arg2[%c0, %c0_0] : memref<16x128xbf16, #tpu.memory_space<vmem>>, vector<16x128xbf16>
    %c0_1 = arith.constant 0 : index
    %c0_2 = arith.constant 0 : index
    %1 = vector.load %arg0[%c0_1, %c0_2] : memref<64x16xf32, #tpu.memory_space<vmem>>, vector<64x16xf32>
    %2 = arith.truncf %1 : vector<64x16xf32> to vector<64x16xbf16>
    %cst = arith.constant dense<0.000000e+00> : vector<64x128xf32>
    %3 = tpu.matmul %2, %0, %cst {dimension_numbers = #tpu.dot_dimension_numbers<[1], [0], [0], [1], [0, 0, 1, 1], [], []>} : vector<64x16xbf16>, vector<16x128xbf16>, vector<64x128xf32> -> vector<64x128xf32>
    %c0_3 = arith.constant 0 : index
    %c0_4 = arith.constant 0 : index
    %4 = vector.load %arg4[%c0_3, %c0_4] : memref<1x128xf32, #tpu.memory_space<vmem>>, vector<1x128xf32>
    %5 = vector.broadcast %4 : vector<1x128xf32> to vector<64x128xf32>
    %6 = arith.addf %3, %5 : vector<64x128xf32>
    %c0_5 = arith.constant 0 : index
    %c0_6 = arith.constant 0 : index
    %7 = vector.load %arg9[%c0_5, %c0_6] : memref<64x128xf32, #tpu.memory_space<vmem>>, vector<64x128xf32>
    tpu.vector_store %arg9[%c0_5, %c0_6], %6 {strides = array<i32>} : memref<64x128xf32, #tpu.memory_space<vmem>>, vector<64x128xf32>,
    %c0_7 = arith.constant 0 : index
    %c0_8 = arith.constant 0 : index
    %8 = vector.load %arg3[%c0_7, %c0_8] : memref<32x128xbf16, #tpu.memory_space<vmem>>, vector<32x128xbf16>
    %c0_9 = arith.constant 0 : index
    %c0_10 = arith.constant 0 : index
    %9 = vector.load %arg5[%c0_9, %c0_10] : memref<32x128xbf16, #tpu.memory_space<vmem>>, vector<32x128xbf16>
    %c0_11 = arith.constant 0 : index
    %c0_12 = arith.constant 0 : index
    %10 = vector.load %arg6[%c0_11, %c0_12] : memref<32x128xbf16, #tpu.memory_space<vmem>>, vector<32x128xbf16>
    %c0_13 = arith.constant 0 : index
    %c0_14 = arith.constant 0 : index
    %11 = vector.load %arg7[%c0_13, %c0_14] : memref<1x128xf32, #tpu.memory_space<vmem>>, vector<1x128xf32>
    %12 = vector.shape_cast %11 : vector<1x128xf32> to vector<1x128xf32>
    %13 = vector.broadcast %12 : vector<1x128xf32> to vector<8x128xf32>
    %cst_15 = arith.constant 0.000000e+00 : f32
    %14 = vector.broadcast %cst_15 : f32 to vector<8x32xf32>
    %c0_16 = arith.constant 0 : index
    %c0_17 = arith.constant 0 : index
    %c0_18 = arith.constant 0 : index
    %15 = vector.load %arg1[%c0_16, %c0_17, %c0_18] : memref<8x8x1xf32, #tpu.memory_space<vmem>>, vector<1x8x1xf32>
    %16 = vector.shape_cast %15 : vector<1x8x1xf32> to vector<8x1xf32>
    %17 = arith.truncf %14 : vector<8x32xf32> to vector<8x32xbf16>
    %cst_19 = arith.constant dense<0.000000e+00> : vector<8x128xf32>
    %18 = tpu.matmul %17, %10, %cst_19 {dimension_numbers = #tpu.dot_dimension_numbers<[1], [0], [0], [1], [0, 0, 1, 1], [], []>} : vector<8x32xbf16>, vector<32x128xbf16>, vector<8x128xf32> -> vector<8x128xf32>
    %c0_20 = arith.constant 0 : index
    %c0_21 = arith.constant 0 : index
    %19 = vector.load %arg9[%c0_20, %c0_21] : memref<64x128xf32, #tpu.memory_space<vmem>>, vector<8x128xf32>
    %20 = arith.truncf %14 : vector<8x32xf32> to vector<8x32xbf16>
    %cst_22 = arith.constant dense<0.000000e+00> : vector<8x128xf32>
    %21 = tpu.matmul %20, %8, %cst_22 {dimension_numbers = #tpu.dot_dimension_numbers<[1], [0], [0], [1], [0, 0, 1, 1], [], []>} : vector<8x32xbf16>, vector<32x128xbf16>, vector<8x128xf32> -> vector<8x128xf32>
    %22 = arith.addf %19, %21 : vector<8x128xf32>
    %23 = arith.negf %22 : vector<8x128xf32>
    %24 = math.exp %23 : vector<8x128xf32>
    %cst_23 = arith.constant 1.000000e+00 : f32
    %25 = vector.broadcast %cst_23 : f32 to vector<8x128xf32>
    %26 = arith.addf %25, %24 : vector<8x128xf32>
    %27 = arith.divf %25, %26 : vector<8x128xf32>
    %28 = math.tanh %22 : vector<8x128xf32>
    %29 = vector.extract_strided_slice %27 {offsets = [0, 0], sizes = [8, 32], strides = [1, 1]} : vector<8x128xf32> to vector<8x32xf32>
    %30 = vector.extract_strided_slice %27 {offsets = [0, 32], sizes = [8, 32], strides = [1, 1]} : vector<8x128xf32> to vector<8x32xf32>
    %31 = vector.extract_strided_slice %28 {offsets = [0, 64], sizes = [8, 32], strides = [1, 1]} : vector<8x128xf32> to vector<8x32xf32>
    %32 = vector.extract_strided_slice %27 {offsets = [0, 96], sizes = [8, 32], strides = [1, 1]} : vector<8x128xf32> to vector<8x32xf32>
    %33 = arith.mulf %30, %14 : vector<8x32xf32>
    %34 = arith.mulf %29, %31 : vector<8x32xf32>
    %35 = arith.addf %33, %34 : vector<8x32xf32>
    %36 = math.tanh %35 : vector<8x32xf32>
    %37 = arith.mulf %32, %36 : vector<8x32xf32>
    %38 = arith.truncf %37 : vector<8x32xf32> to vector<8x32xbf16>
    %cst_24 = arith.constant dense<0.000000e+00> : vector<8x128xf32>
    %39 = tpu.matmul %38, %9, %cst_24 {dimension_numbers = #tpu.dot_dimension_numbers<[1], [0], [0], [1], [0, 0, 1, 1], [], []>} : vector<8x32xbf16>, vector<32x128xbf16>, vector<8x128xf32> -> vector<8x128xf32>
    %40 = arith.addf %18, %39 : vector<8x128xf32>
    %41 = arith.addf %40, %13 : vector<8x128xf32>
    %42 = arith.negf %41 : vector<8x128xf32>
    %43 = math.exp %42 : vector<8x128xf32>
    %cst_25 = arith.constant 1.000000e+00 : f32
    %44 = vector.broadcast %cst_25 : f32 to vector<8x128xf32>
    %45 = arith.addf %44, %43 : vector<8x128xf32>
    %46 = arith.divf %44, %45 : vector<8x128xf32>
    %47 = math.tanh %41 : vector<8x128xf32>
    %48 = vector.extract_strided_slice %46 {offsets = [0, 0], sizes = [8, 32], strides = [1, 1]} : vector<8x128xf32> to vector<8x32xf32>
    %49 = vector.extract_strided_slice %46 {offsets = [0, 32], sizes = [8, 32], strides = [1, 1]} : vector<8x128xf32> to vector<8x32xf32>
    %50 = vector.extract_strided_slice %47 {offsets = [0, 64], sizes = [8, 32], strides = [1, 1]} : vector<8x128xf32> to vector<8x32xf32>
    %51 = vector.extract_strided_slice %46 {offsets = [0, 96], sizes = [8, 32], strides = [1, 1]} : vector<8x128xf32> to vector<8x32xf32>
    %52 = arith.mulf %49, %14 : vector<8x32xf32>
    %53 = arith.mulf %48, %50 : vector<8x32xf32>
    %54 = arith.addf %52, %53 : vector<8x32xf32>
    %55 = math.tanh %54 : vector<8x32xf32>
    %56 = arith.mulf %51, %55 : vector<8x32xf32>
    %57 = vector.broadcast %16 : vector<8x1xf32> to vector<8x32xf32>
    %58 = arith.mulf %56, %57 : vector<8x32xf32>
    %59 = arith.addf %14, %58 : vector<8x32xf32>
    %c1 = arith.constant 1 : index
    %c0_26 = arith.constant 0 : index
    %c0_27 = arith.constant 0 : index
    %60 = vector.load %arg1[%c1, %c0_26, %c0_27] : memref<8x8x1xf32, #tpu.memory_space<vmem>>, vector<1x8x1xf32>
    %61 = vector.shape_cast %60 : vector<1x8x1xf32> to vector<8x1xf32>
    %62 = arith.truncf %56 : vector<8x32xf32> to vector<8x32xbf16>
    %cst_28 = arith.constant dense<0.000000e+00> : vector<8x128xf32>
    %63 = tpu.matmul %62, %10, %cst_28 {dimension_numbers = #tpu.dot_dimension_numbers<[1], [0], [0], [1], [0, 0, 1, 1], [], []>} : vector<8x32xbf16>, vector<32x128xbf16>, vector<8x128xf32> -> vector<8x128xf32>
    %c8 = arith.constant 8 : index
    %c0_29 = arith.constant 0 : index
    %64 = vector.load %arg9[%c8, %c0_29] : memref<64x128xf32, #tpu.memory_space<vmem>>, vector<8x128xf32>
    %65 = arith.truncf %37 : vector<8x32xf32> to vector<8x32xbf16>
    %cst_30 = arith.constant dense<0.000000e+00> : vector<8x128xf32>
    %66 = tpu.matmul %65, %8, %cst_30 {dimension_numbers = #tpu.dot_dimension_numbers<[1], [0], [0], [1], [0, 0, 1, 1], [], []>} : vector<8x32xbf16>, vector<32x128xbf16>, vector<8x128xf32> -> vector<8x128xf32>
    %67 = arith.addf %64, %66 : vector<8x128xf32>
    %68 = arith.negf %67 : vector<8x128xf32>
    %69 = math.exp %68 : vector<8x128xf32>
    %cst_31 = arith.constant 1.000000e+00 : f32
    %70 = vector.broadcast %cst_31 : f32 to vector<8x128xf32>
    %71 = arith.addf %70, %69 : vector<8x128xf32>
    %72 = arith.divf %70, %71 : vector<8x128xf32>
    %73 = math.tanh %67 : vector<8x128xf32>
    %74 = vector.extract_strided_slice %72 {offsets = [0, 0], sizes = [8, 32], strides = [1, 1]} : vector<8x128xf32> to vector<8x32xf32>
    %75 = vector.extract_strided_slice %72 {offsets = [0, 32], sizes = [8, 32], strides = [1, 1]} : vector<8x128xf32> to vector<8x32xf32>
    %76 = vector.extract_strided_slice %73 {offsets = [0, 64], sizes = [8, 32], strides = [1, 1]} : vector<8x128xf32> to vector<8x32xf32>
    %77 = vector.extract_strided_slice %72 {offsets = [0, 96], sizes = [8, 32], strides = [1, 1]} : vector<8x128xf32> to vector<8x32xf32>
    %78 = arith.mulf %75, %35 : vector<8x32xf32>
    %79 = arith.mulf %74, %76 : vector<8x32xf32>
    %80 = arith.addf %78, %79 : vector<8x32xf32>
    %81 = math.tanh %80 : vector<8x32xf32>
    %82 = arith.mulf %77, %81 : vector<8x32xf32>
    %83 = arith.truncf %82 : vector<8x32xf32> to vector<8x32xbf16>
    %cst_32 = arith.constant dense<0.000000e+00> : vector<8x128xf32>
    %84 = tpu.matmul %83, %9, %cst_32 {dimension_numbers = #tpu.dot_dimension_numbers<[1], [0], [0], [1], [0, 0, 1, 1], [], []>} : vector<8x32xbf16>, vector<32x128xbf16>, vector<8x128xf32> -> vector<8x128xf32>
    %85 = arith.addf %63, %84 : vector<8x128xf32>
    %86 = arith.addf %85, %13 : vector<8x128xf32>
    %87 = arith.negf %86 : vector<8x128xf32>
    %88 = math.exp %87 : vector<8x128xf32>
    %cst_33 = arith.constant 1.000000e+00 : f32
    %89 = vector.broadcast %cst_33 : f32 to vector<8x128xf32>
    %90 = arith.addf %89, %88 : vector<8x128xf32>
    %91 = arith.divf %89, %90 : vector<8x128xf32>
    %92 = math.tanh %86 : vector<8x128xf32>
    %93 = vector.extract_strided_slice %91 {offsets = [0, 0], sizes = [8, 32], strides = [1, 1]} : vector<8x128xf32> to vector<8x32xf32>
    %94 = vector.extract_strided_slice %91 {offsets = [0, 32], sizes = [8, 32], strides = [1, 1]} : vector<8x128xf32> to vector<8x32xf32>
    %95 = vector.extract_strided_slice %92 {offsets = [0, 64], sizes = [8, 32], strides = [1, 1]} : vector<8x128xf32> to vector<8x32xf32>
    %96 = vector.extract_strided_slice %91 {offsets = [0, 96], sizes = [8, 32], strides = [1, 1]} : vector<8x128xf32> to vector<8x32xf32>
    %97 = arith.mulf %94, %54 : vector<8x32xf32>
    %98 = arith.mulf %93, %95 : vector<8x32xf32>
    %99 = arith.addf %97, %98 : vector<8x32xf32>
    %100 = math.tanh %99 : vector<8x32xf32>
    %101 = arith.mulf %96, %100 : vector<8x32xf32>
    %102 = vector.broadcast %61 : vector<8x1xf32> to vector<8x32xf32>
    %103 = arith.mulf %101, %102 : vector<8x32xf32>
    %104 = arith.addf %59, %103 : vector<8x32xf32>
    %c2 = arith.constant 2 : index
    %c0_34 = arith.constant 0 : index
    %c0_35 = arith.constant 0 : index
    %105 = vector.load %arg1[%c2, %c0_34, %c0_35] : memref<8x8x1xf32, #tpu.memory_space<vmem>>, vector<1x8x1xf32>
    %106 = vector.shape_cast %105 : vector<1x8x1xf32> to vector<8x1xf32>
    %107 = arith.truncf %101 : vector<8x32xf32> to vector<8x32xbf16>
    %cst_36 = arith.constant dense<0.000000e+00> : vector<8x128xf32>
    %108 = tpu.matmul %107, %10, %cst_36 {dimension_numbers = #tpu.dot_dimension_numbers<[1], [0], [0], [1], [0, 0, 1, 1], [], []>} : vector<8x32xbf16>, vector<32x128xbf16>, vector<8x128xf32> -> vector<8x128xf32>
    %c16 = arith.constant 16 : index
    %c0_37 = arith.constant 0 : index
    %109 = vector.load %arg9[%c16, %c0_37] : memref<64x128xf32, #tpu.memory_space<vmem>>, vector<8x128xf32>
    %110 = arith.truncf %82 : vector<8x32xf32> to vector<8x32xbf16>
    %cst_38 = arith.constant dense<0.000000e+00> : vector<8x128xf32>
    %111 = tpu.matmul %110, %8, %cst_38 {dimension_numbers = #tpu.dot_dimension_numbers<[1], [0], [0], [1], [0, 0, 1, 1], [], []>} : vector<8x32xbf16>, vector<32x128xbf16>, vector<8x128xf32> -> vector<8x128xf32>
    %112 = arith.addf %109, %111 : vector<8x128xf32>
    %113 = arith.negf %112 : vector<8x128xf32>
    %114 = math.exp %113 : vector<8x128xf32>
    %cst_39 = arith.constant 1.000000e+00 : f32
    %115 = vector.broadcast %cst_39 : f32 to vector<8x128xf32>
    %116 = arith.addf %115, %114 : vector<8x128xf32>
    %117 = arith.divf %115, %116 : vector<8x128xf32>
    %118 = math.tanh %112 : vector<8x128xf32>
    %119 = vector.extract_strided_slice %117 {offsets = [0, 0], sizes = [8, 32], strides = [1, 1]} : vector<8x128xf32> to vector<8x32xf32>
    %120 = vector.extract_strided_slice %117 {offsets = [0, 32], sizes = [8, 32], strides = [1, 1]} : vector<8x128xf32> to vector<8x32xf32>
    %121 = vector.extract_strided_slice %118 {offsets = [0, 64], sizes = [8, 32], strides = [1, 1]} : vector<8x128xf32> to vector<8x32xf32>
    %122 = vector.extract_strided_slice %117 {offsets = [0, 96], sizes = [8, 32], strides = [1, 1]} : vector<8x128xf32> to vector<8x32xf32>
    %123 = arith.mulf %120, %80 : vector<8x32xf32>
    %124 = arith.mulf %119, %121 : vector<8x32xf32>
    %125 = arith.addf %123, %124 : vector<8x32xf32>
    %126 = math.tanh %125 : vector<8x32xf32>
    %127 = arith.mulf %122, %126 : vector<8x32xf32>
    %128 = arith.truncf %127 : vector<8x32xf32> to vector<8x32xbf16>
    %cst_40 = arith.constant dense<0.000000e+00> : vector<8x128xf32>
    %129 = tpu.matmul %128, %9, %cst_40 {dimension_numbers = #tpu.dot_dimension_numbers<[1], [0], [0], [1], [0, 0, 1, 1], [], []>} : vector<8x32xbf16>, vector<32x128xbf16>, vector<8x128xf32> -> vector<8x128xf32>
    %130 = arith.addf %108, %129 : vector<8x128xf32>
    %131 = arith.addf %130, %13 : vector<8x128xf32>
    %132 = arith.negf %131 : vector<8x128xf32>
    %133 = math.exp %132 : vector<8x128xf32>
    %cst_41 = arith.constant 1.000000e+00 : f32
    %134 = vector.broadcast %cst_41 : f32 to vector<8x128xf32>
    %135 = arith.addf %134, %133 : vector<8x128xf32>
    %136 = arith.divf %134, %135 : vector<8x128xf32>
    %137 = math.tanh %131 : vector<8x128xf32>
    %138 = vector.extract_strided_slice %136 {offsets = [0, 0], sizes = [8, 32], strides = [1, 1]} : vector<8x128xf32> to vector<8x32xf32>
    %139 = vector.extract_strided_slice %136 {offsets = [0, 32], sizes = [8, 32], strides = [1, 1]} : vector<8x128xf32> to vector<8x32xf32>
    %140 = vector.extract_strided_slice %137 {offsets = [0, 64], sizes = [8, 32], strides = [1, 1]} : vector<8x128xf32> to vector<8x32xf32>
    %141 = vector.extract_strided_slice %136 {offsets = [0, 96], sizes = [8, 32], strides = [1, 1]} : vector<8x128xf32> to vector<8x32xf32>
    %142 = arith.mulf %139, %99 : vector<8x32xf32>
    %143 = arith.mulf %138, %140 : vector<8x32xf32>
    %144 = arith.addf %142, %143 : vector<8x32xf32>
    %145 = math.tanh %144 : vector<8x32xf32>
    %146 = arith.mulf %141, %145 : vector<8x32xf32>
    %147 = vector.broadcast %106 : vector<8x1xf32> to vector<8x32xf32>
    %148 = arith.mulf %146, %147 : vector<8x32xf32>
    %149 = arith.addf %104, %148 : vector<8x32xf32>
    %c3 = arith.constant 3 : index
    %c0_42 = arith.constant 0 : index
    %c0_43 = arith.constant 0 : index
    %150 = vector.load %arg1[%c3, %c0_42, %c0_43] : memref<8x8x1xf32, #tpu.memory_space<vmem>>, vector<1x8x1xf32>
    %151 = vector.shape_cast %150 : vector<1x8x1xf32> to vector<8x1xf32>
    %152 = arith.truncf %146 : vector<8x32xf32> to vector<8x32xbf16>
    %cst_44 = arith.constant dense<0.000000e+00> : vector<8x128xf32>
    %153 = tpu.matmul %152, %10, %cst_44 {dimension_numbers = #tpu.dot_dimension_numbers<[1], [0], [0], [1], [0, 0, 1, 1], [], []>} : vector<8x32xbf16>, vector<32x128xbf16>, vector<8x128xf32> -> vector<8x128xf32>
    %c24 = arith.constant 24 : index
    %c0_45 = arith.constant 0 : index
    %154 = vector.load %arg9[%c24, %c0_45] : memref<64x128xf32, #tpu.memory_space<vmem>>, vector<8x128xf32>
    %155 = arith.truncf %127 : vector<8x32xf32> to vector<8x32xbf16>
    %cst_46 = arith.constant dense<0.000000e+00> : vector<8x128xf32>
    %156 = tpu.matmul %155, %8, %cst_46 {dimension_numbers = #tpu.dot_dimension_numbers<[1], [0], [0], [1], [0, 0, 1, 1], [], []>} : vector<8x32xbf16>, vector<32x128xbf16>, vector<8x128xf32> -> vector<8x128xf32>
    %157 = arith.addf %154, %156 : vector<8x128xf32>
    %158 = arith.negf %157 : vector<8x128xf32>
    %159 = math.exp %158 : vector<8x128xf32>
    %cst_47 = arith.constant 1.000000e+00 : f32
    %160 = vector.broadcast %cst_47 : f32 to vector<8x128xf32>
    %161 = arith.addf %160, %159 : vector<8x128xf32>
    %162 = arith.divf %160, %161 : vector<8x128xf32>
    %163 = math.tanh %157 : vector<8x128xf32>
    %164 = vector.extract_strided_slice %162 {offsets = [0, 0], sizes = [8, 32], strides = [1, 1]} : vector<8x128xf32> to vector<8x32xf32>
    %165 = vector.extract_strided_slice %162 {offsets = [0, 32], sizes = [8, 32], strides = [1, 1]} : vector<8x128xf32> to vector<8x32xf32>
    %166 = vector.extract_strided_slice %163 {offsets = [0, 64], sizes = [8, 32], strides = [1, 1]} : vector<8x128xf32> to vector<8x32xf32>
    %167 = vector.extract_strided_slice %162 {offsets = [0, 96], sizes = [8, 32], strides = [1, 1]} : vector<8x128xf32> to vector<8x32xf32>
    %168 = arith.mulf %165, %125 : vector<8x32xf32>
    %169 = arith.mulf %164, %166 : vector<8x32xf32>
    %170 = arith.addf %168, %169 : vector<8x32xf32>
    %171 = math.tanh %170 : vector<8x32xf32>
    %172 = arith.mulf %167, %171 : vector<8x32xf32>
    %173 = arith.truncf %172 : vector<8x32xf32> to vector<8x32xbf16>
    %cst_48 = arith.constant dense<0.000000e+00> : vector<8x128xf32>
    %174 = tpu.matmul %173, %9, %cst_48 {dimension_numbers = #tpu.dot_dimension_numbers<[1], [0], [0], [1], [0, 0, 1, 1], [], []>} : vector<8x32xbf16>, vector<32x128xbf16>, vector<8x128xf32> -> vector<8x128xf32>
    %175 = arith.addf %153, %174 : vector<8x128xf32>
    %176 = arith.addf %175, %13 : vector<8x128xf32>
    %177 = arith.negf %176 : vector<8x128xf32>
    %178 = math.exp %177 : vector<8x128xf32>
    %cst_49 = arith.constant 1.000000e+00 : f32
    %179 = vector.broadcast %cst_49 : f32 to vector<8x128xf32>
    %180 = arith.addf %179, %178 : vector<8x128xf32>
    %181 = arith.divf %179, %180 : vector<8x128xf32>
    %182 = math.tanh %176 : vector<8x128xf32>
    %183 = vector.extract_strided_slice %181 {offsets = [0, 0], sizes = [8, 32], strides = [1, 1]} : vector<8x128xf32> to vector<8x32xf32>
    %184 = vector.extract_strided_slice %181 {offsets = [0, 32], sizes = [8, 32], strides = [1, 1]} : vector<8x128xf32> to vector<8x32xf32>
    %185 = vector.extract_strided_slice %182 {offsets = [0, 64], sizes = [8, 32], strides = [1, 1]} : vector<8x128xf32> to vector<8x32xf32>
    %186 = vector.extract_strided_slice %181 {offsets = [0, 96], sizes = [8, 32], strides = [1, 1]} : vector<8x128xf32> to vector<8x32xf32>
    %187 = arith.mulf %184, %144 : vector<8x32xf32>
    %188 = arith.mulf %183, %185 : vector<8x32xf32>
    %189 = arith.addf %187, %188 : vector<8x32xf32>
    %190 = math.tanh %189 : vector<8x32xf32>
    %191 = arith.mulf %186, %190 : vector<8x32xf32>
    %192 = vector.broadcast %151 : vector<8x1xf32> to vector<8x32xf32>
    %193 = arith.mulf %191, %192 : vector<8x32xf32>
    %194 = arith.addf %149, %193 : vector<8x32xf32>
    %c4 = arith.constant 4 : index
    %c0_50 = arith.constant 0 : index
    %c0_51 = arith.constant 0 : index
    %195 = vector.load %arg1[%c4, %c0_50, %c0_51] : memref<8x8x1xf32, #tpu.memory_space<vmem>>, vector<1x8x1xf32>
    %196 = vector.shape_cast %195 : vector<1x8x1xf32> to vector<8x1xf32>
    %197 = arith.truncf %191 : vector<8x32xf32> to vector<8x32xbf16>
    %cst_52 = arith.constant dense<0.000000e+00> : vector<8x128xf32>
    %198 = tpu.matmul %197, %10, %cst_52 {dimension_numbers = #tpu.dot_dimension_numbers<[1], [0], [0], [1], [0, 0, 1, 1], [], []>} : vector<8x32xbf16>, vector<32x128xbf16>, vector<8x128xf32> -> vector<8x128xf32>
    %c32 = arith.constant 32 : index
    %c0_53 = arith.constant 0 : index
    %199 = vector.load %arg9[%c32, %c0_53] : memref<64x128xf32, #tpu.memory_space<vmem>>, vector<8x128xf32>
    %200 = arith.truncf %172 : vector<8x32xf32> to vector<8x32xbf16>
    %cst_54 = arith.constant dense<0.000000e+00> : vector<8x128xf32>
    %201 = tpu.matmul %200, %8, %cst_54 {dimension_numbers = #tpu.dot_dimension_numbers<[1], [0], [0], [1], [0, 0, 1, 1], [], []>} : vector<8x32xbf16>, vector<32x128xbf16>, vector<8x128xf32> -> vector<8x128xf32>
    %202 = arith.addf %199, %201 : vector<8x128xf32>
    %203 = arith.negf %202 : vector<8x128xf32>
    %204 = math.exp %203 : vector<8x128xf32>
    %cst_55 = arith.constant 1.000000e+00 : f32
    %205 = vector.broadcast %cst_55 : f32 to vector<8x128xf32>
    %206 = arith.addf %205, %204 : vector<8x128xf32>
    %207 = arith.divf %205, %206 : vector<8x128xf32>
    %208 = math.tanh %202 : vector<8x128xf32>
    %209 = vector.extract_strided_slice %207 {offsets = [0, 0], sizes = [8, 32], strides = [1, 1]} : vector<8x128xf32> to vector<8x32xf32>
    %210 = vector.extract_strided_slice %207 {offsets = [0, 32], sizes = [8, 32], strides = [1, 1]} : vector<8x128xf32> to vector<8x32xf32>
    %211 = vector.extract_strided_slice %208 {offsets = [0, 64], sizes = [8, 32], strides = [1, 1]} : vector<8x128xf32> to vector<8x32xf32>
    %212 = vector.extract_strided_slice %207 {offsets = [0, 96], sizes = [8, 32], strides = [1, 1]} : vector<8x128xf32> to vector<8x32xf32>
    %213 = arith.mulf %210, %170 : vector<8x32xf32>
    %214 = arith.mulf %209, %211 : vector<8x32xf32>
    %215 = arith.addf %213, %214 : vector<8x32xf32>
    %216 = math.tanh %215 : vector<8x32xf32>
    %217 = arith.mulf %212, %216 : vector<8x32xf32>
    %218 = arith.truncf %217 : vector<8x32xf32> to vector<8x32xbf16>
    %cst_56 = arith.constant dense<0.000000e+00> : vector<8x128xf32>
    %219 = tpu.matmul %218, %9, %cst_56 {dimension_numbers = #tpu.dot_dimension_numbers<[1], [0], [0], [1], [0, 0, 1, 1], [], []>} : vector<8x32xbf16>, vector<32x128xbf16>, vector<8x128xf32> -> vector<8x128xf32>
    %220 = arith.addf %198, %219 : vector<8x128xf32>
    %221 = arith.addf %220, %13 : vector<8x128xf32>
    %222 = arith.negf %221 : vector<8x128xf32>
    %223 = math.exp %222 : vector<8x128xf32>
    %cst_57 = arith.constant 1.000000e+00 : f32
    %224 = vector.broadcast %cst_57 : f32 to vector<8x128xf32>
    %225 = arith.addf %224, %223 : vector<8x128xf32>
    %226 = arith.divf %224, %225 : vector<8x128xf32>
    %227 = math.tanh %221 : vector<8x128xf32>
    %228 = vector.extract_strided_slice %226 {offsets = [0, 0], sizes = [8, 32], strides = [1, 1]} : vector<8x128xf32> to vector<8x32xf32>
    %229 = vector.extract_strided_slice %226 {offsets = [0, 32], sizes = [8, 32], strides = [1, 1]} : vector<8x128xf32> to vector<8x32xf32>
    %230 = vector.extract_strided_slice %227 {offsets = [0, 64], sizes = [8, 32], strides = [1, 1]} : vector<8x128xf32> to vector<8x32xf32>
    %231 = vector.extract_strided_slice %226 {offsets = [0, 96], sizes = [8, 32], strides = [1, 1]} : vector<8x128xf32> to vector<8x32xf32>
    %232 = arith.mulf %229, %189 : vector<8x32xf32>
    %233 = arith.mulf %228, %230 : vector<8x32xf32>
    %234 = arith.addf %232, %233 : vector<8x32xf32>
    %235 = math.tanh %234 : vector<8x32xf32>
    %236 = arith.mulf %231, %235 : vector<8x32xf32>
    %237 = vector.broadcast %196 : vector<8x1xf32> to vector<8x32xf32>
    %238 = arith.mulf %236, %237 : vector<8x32xf32>
    %239 = arith.addf %194, %238 : vector<8x32xf32>
    %c5 = arith.constant 5 : index
    %c0_58 = arith.constant 0 : index
    %c0_59 = arith.constant 0 : index
    %240 = vector.load %arg1[%c5, %c0_58, %c0_59] : memref<8x8x1xf32, #tpu.memory_space<vmem>>, vector<1x8x1xf32>
    %241 = vector.shape_cast %240 : vector<1x8x1xf32> to vector<8x1xf32>
    %242 = arith.truncf %236 : vector<8x32xf32> to vector<8x32xbf16>
    %cst_60 = arith.constant dense<0.000000e+00> : vector<8x128xf32>
    %243 = tpu.matmul %242, %10, %cst_60 {dimension_numbers = #tpu.dot_dimension_numbers<[1], [0], [0], [1], [0, 0, 1, 1], [], []>} : vector<8x32xbf16>, vector<32x128xbf16>, vector<8x128xf32> -> vector<8x128xf32>
    %c40 = arith.constant 40 : index
    %c0_61 = arith.constant 0 : index
    %244 = vector.load %arg9[%c40, %c0_61] : memref<64x128xf32, #tpu.memory_space<vmem>>, vector<8x128xf32>
    %245 = arith.truncf %217 : vector<8x32xf32> to vector<8x32xbf16>
    %cst_62 = arith.constant dense<0.000000e+00> : vector<8x128xf32>
    %246 = tpu.matmul %245, %8, %cst_62 {dimension_numbers = #tpu.dot_dimension_numbers<[1], [0], [0], [1], [0, 0, 1, 1], [], []>} : vector<8x32xbf16>, vector<32x128xbf16>, vector<8x128xf32> -> vector<8x128xf32>
    %247 = arith.addf %244, %246 : vector<8x128xf32>
    %248 = arith.negf %247 : vector<8x128xf32>
    %249 = math.exp %248 : vector<8x128xf32>
    %cst_63 = arith.constant 1.000000e+00 : f32
    %250 = vector.broadcast %cst_63 : f32 to vector<8x128xf32>
    %251 = arith.addf %250, %249 : vector<8x128xf32>
    %252 = arith.divf %250, %251 : vector<8x128xf32>
    %253 = math.tanh %247 : vector<8x128xf32>
    %254 = vector.extract_strided_slice %252 {offsets = [0, 0], sizes = [8, 32], strides = [1, 1]} : vector<8x128xf32> to vector<8x32xf32>
    %255 = vector.extract_strided_slice %252 {offsets = [0, 32], sizes = [8, 32], strides = [1, 1]} : vector<8x128xf32> to vector<8x32xf32>
    %256 = vector.extract_strided_slice %253 {offsets = [0, 64], sizes = [8, 32], strides = [1, 1]} : vector<8x128xf32> to vector<8x32xf32>
    %257 = vector.extract_strided_slice %252 {offsets = [0, 96], sizes = [8, 32], strides = [1, 1]} : vector<8x128xf32> to vector<8x32xf32>
    %258 = arith.mulf %255, %215 : vector<8x32xf32>
    %259 = arith.mulf %254, %256 : vector<8x32xf32>
    %260 = arith.addf %258, %259 : vector<8x32xf32>
    %261 = math.tanh %260 : vector<8x32xf32>
    %262 = arith.mulf %257, %261 : vector<8x32xf32>
    %263 = arith.truncf %262 : vector<8x32xf32> to vector<8x32xbf16>
    %cst_64 = arith.constant dense<0.000000e+00> : vector<8x128xf32>
    %264 = tpu.matmul %263, %9, %cst_64 {dimension_numbers = #tpu.dot_dimension_numbers<[1], [0], [0], [1], [0, 0, 1, 1], [], []>} : vector<8x32xbf16>, vector<32x128xbf16>, vector<8x128xf32> -> vector<8x128xf32>
    %265 = arith.addf %243, %264 : vector<8x128xf32>
    %266 = arith.addf %265, %13 : vector<8x128xf32>
    %267 = arith.negf %266 : vector<8x128xf32>
    %268 = math.exp %267 : vector<8x128xf32>
    %cst_65 = arith.constant 1.000000e+00 : f32
    %269 = vector.broadcast %cst_65 : f32 to vector<8x128xf32>
    %270 = arith.addf %269, %268 : vector<8x128xf32>
    %271 = arith.divf %269, %270 : vector<8x128xf32>
    %272 = math.tanh %266 : vector<8x128xf32>
    %273 = vector.extract_strided_slice %271 {offsets = [0, 0], sizes = [8, 32], strides = [1, 1]} : vector<8x128xf32> to vector<8x32xf32>
    %274 = vector.extract_strided_slice %271 {offsets = [0, 32], sizes = [8, 32], strides = [1, 1]} : vector<8x128xf32> to vector<8x32xf32>
    %275 = vector.extract_strided_slice %272 {offsets = [0, 64], sizes = [8, 32], strides = [1, 1]} : vector<8x128xf32> to vector<8x32xf32>
    %276 = vector.extract_strided_slice %271 {offsets = [0, 96], sizes = [8, 32], strides = [1, 1]} : vector<8x128xf32> to vector<8x32xf32>
    %277 = arith.mulf %274, %234 : vector<8x32xf32>
    %278 = arith.mulf %273, %275 : vector<8x32xf32>
    %279 = arith.addf %277, %278 : vector<8x32xf32>
    %280 = math.tanh %279 : vector<8x32xf32>
    %281 = arith.mulf %276, %280 : vector<8x32xf32>
    %282 = vector.broadcast %241 : vector<8x1xf32> to vector<8x32xf32>
    %283 = arith.mulf %281, %282 : vector<8x32xf32>
    %284 = arith.addf %239, %283 : vector<8x32xf32>
    %c6 = arith.constant 6 : index
    %c0_66 = arith.constant 0 : index
    %c0_67 = arith.constant 0 : index
    %285 = vector.load %arg1[%c6, %c0_66, %c0_67] : memref<8x8x1xf32, #tpu.memory_space<vmem>>, vector<1x8x1xf32>
    %286 = vector.shape_cast %285 : vector<1x8x1xf32> to vector<8x1xf32>
    %287 = arith.truncf %281 : vector<8x32xf32> to vector<8x32xbf16>
    %cst_68 = arith.constant dense<0.000000e+00> : vector<8x128xf32>
    %288 = tpu.matmul %287, %10, %cst_68 {dimension_numbers = #tpu.dot_dimension_numbers<[1], [0], [0], [1], [0, 0, 1, 1], [], []>} : vector<8x32xbf16>, vector<32x128xbf16>, vector<8x128xf32> -> vector<8x128xf32>
    %c48 = arith.constant 48 : index
    %c0_69 = arith.constant 0 : index
    %289 = vector.load %arg9[%c48, %c0_69] : memref<64x128xf32, #tpu.memory_space<vmem>>, vector<8x128xf32>
    %290 = arith.truncf %262 : vector<8x32xf32> to vector<8x32xbf16>
    %cst_70 = arith.constant dense<0.000000e+00> : vector<8x128xf32>
    %291 = tpu.matmul %290, %8, %cst_70 {dimension_numbers = #tpu.dot_dimension_numbers<[1], [0], [0], [1], [0, 0, 1, 1], [], []>} : vector<8x32xbf16>, vector<32x128xbf16>, vector<8x128xf32> -> vector<8x128xf32>
    %292 = arith.addf %289, %291 : vector<8x128xf32>
    %293 = arith.negf %292 : vector<8x128xf32>
    %294 = math.exp %293 : vector<8x128xf32>
    %cst_71 = arith.constant 1.000000e+00 : f32
    %295 = vector.broadcast %cst_71 : f32 to vector<8x128xf32>
    %296 = arith.addf %295, %294 : vector<8x128xf32>
    %297 = arith.divf %295, %296 : vector<8x128xf32>
    %298 = math.tanh %292 : vector<8x128xf32>
    %299 = vector.extract_strided_slice %297 {offsets = [0, 0], sizes = [8, 32], strides = [1, 1]} : vector<8x128xf32> to vector<8x32xf32>
    %300 = vector.extract_strided_slice %297 {offsets = [0, 32], sizes = [8, 32], strides = [1, 1]} : vector<8x128xf32> to vector<8x32xf32>
    %301 = vector.extract_strided_slice %298 {offsets = [0, 64], sizes = [8, 32], strides = [1, 1]} : vector<8x128xf32> to vector<8x32xf32>
    %302 = vector.extract_strided_slice %297 {offsets = [0, 96], sizes = [8, 32], strides = [1, 1]} : vector<8x128xf32> to vector<8x32xf32>
    %303 = arith.mulf %300, %260 : vector<8x32xf32>
    %304 = arith.mulf %299, %301 : vector<8x32xf32>
    %305 = arith.addf %303, %304 : vector<8x32xf32>
    %306 = math.tanh %305 : vector<8x32xf32>
    %307 = arith.mulf %302, %306 : vector<8x32xf32>
    %308 = arith.truncf %307 : vector<8x32xf32> to vector<8x32xbf16>
    %cst_72 = arith.constant dense<0.000000e+00> : vector<8x128xf32>
    %309 = tpu.matmul %308, %9, %cst_72 {dimension_numbers = #tpu.dot_dimension_numbers<[1], [0], [0], [1], [0, 0, 1, 1], [], []>} : vector<8x32xbf16>, vector<32x128xbf16>, vector<8x128xf32> -> vector<8x128xf32>
    %310 = arith.addf %288, %309 : vector<8x128xf32>
    %311 = arith.addf %310, %13 : vector<8x128xf32>
    %312 = arith.negf %311 : vector<8x128xf32>
    %313 = math.exp %312 : vector<8x128xf32>
    %cst_73 = arith.constant 1.000000e+00 : f32
    %314 = vector.broadcast %cst_73 : f32 to vector<8x128xf32>
    %315 = arith.addf %314, %313 : vector<8x128xf32>
    %316 = arith.divf %314, %315 : vector<8x128xf32>
    %317 = math.tanh %311 : vector<8x128xf32>
    %318 = vector.extract_strided_slice %316 {offsets = [0, 0], sizes = [8, 32], strides = [1, 1]} : vector<8x128xf32> to vector<8x32xf32>
    %319 = vector.extract_strided_slice %316 {offsets = [0, 32], sizes = [8, 32], strides = [1, 1]} : vector<8x128xf32> to vector<8x32xf32>
    %320 = vector.extract_strided_slice %317 {offsets = [0, 64], sizes = [8, 32], strides = [1, 1]} : vector<8x128xf32> to vector<8x32xf32>
    %321 = vector.extract_strided_slice %316 {offsets = [0, 96], sizes = [8, 32], strides = [1, 1]} : vector<8x128xf32> to vector<8x32xf32>
    %322 = arith.mulf %319, %279 : vector<8x32xf32>
    %323 = arith.mulf %318, %320 : vector<8x32xf32>
    %324 = arith.addf %322, %323 : vector<8x32xf32>
    %325 = math.tanh %324 : vector<8x32xf32>
    %326 = arith.mulf %321, %325 : vector<8x32xf32>
    %327 = vector.broadcast %286 : vector<8x1xf32> to vector<8x32xf32>
    %328 = arith.mulf %326, %327 : vector<8x32xf32>
    %329 = arith.addf %284, %328 : vector<8x32xf32>
    %c7 = arith.constant 7 : index
    %c0_74 = arith.constant 0 : index
    %c0_75 = arith.constant 0 : index
    %330 = vector.load %arg1[%c7, %c0_74, %c0_75] : memref<8x8x1xf32, #tpu.memory_space<vmem>>, vector<1x8x1xf32>
    %331 = vector.shape_cast %330 : vector<1x8x1xf32> to vector<8x1xf32>
    %332 = arith.truncf %326 : vector<8x32xf32> to vector<8x32xbf16>
    %cst_76 = arith.constant dense<0.000000e+00> : vector<8x128xf32>
    %333 = tpu.matmul %332, %10, %cst_76 {dimension_numbers = #tpu.dot_dimension_numbers<[1], [0], [0], [1], [0, 0, 1, 1], [], []>} : vector<8x32xbf16>, vector<32x128xbf16>, vector<8x128xf32> -> vector<8x128xf32>
    %c56 = arith.constant 56 : index
    %c0_77 = arith.constant 0 : index
    %334 = vector.load %arg9[%c56, %c0_77] : memref<64x128xf32, #tpu.memory_space<vmem>>, vector<8x128xf32>
    %335 = arith.truncf %307 : vector<8x32xf32> to vector<8x32xbf16>
    %cst_78 = arith.constant dense<0.000000e+00> : vector<8x128xf32>
    %336 = tpu.matmul %335, %8, %cst_78 {dimension_numbers = #tpu.dot_dimension_numbers<[1], [0], [0], [1], [0, 0, 1, 1], [], []>} : vector<8x32xbf16>, vector<32x128xbf16>, vector<8x128xf32> -> vector<8x128xf32>
    %337 = arith.addf %334, %336 : vector<8x128xf32>
    %338 = arith.negf %337 : vector<8x128xf32>
    %339 = math.exp %338 : vector<8x128xf32>
    %cst_79 = arith.constant 1.000000e+00 : f32
    %340 = vector.broadcast %cst_79 : f32 to vector<8x128xf32>
    %341 = arith.addf %340, %339 : vector<8x128xf32>
    %342 = arith.divf %340, %341 : vector<8x128xf32>
    %343 = math.tanh %337 : vector<8x128xf32>
    %344 = vector.extract_strided_slice %342 {offsets = [0, 0], sizes = [8, 32], strides = [1, 1]} : vector<8x128xf32> to vector<8x32xf32>
    %345 = vector.extract_strided_slice %342 {offsets = [0, 32], sizes = [8, 32], strides = [1, 1]} : vector<8x128xf32> to vector<8x32xf32>
    %346 = vector.extract_strided_slice %343 {offsets = [0, 64], sizes = [8, 32], strides = [1, 1]} : vector<8x128xf32> to vector<8x32xf32>
    %347 = vector.extract_strided_slice %342 {offsets = [0, 96], sizes = [8, 32], strides = [1, 1]} : vector<8x128xf32> to vector<8x32xf32>
    %348 = arith.mulf %345, %305 : vector<8x32xf32>
    %349 = arith.mulf %344, %346 : vector<8x32xf32>
    %350 = arith.addf %348, %349 : vector<8x32xf32>
    %351 = math.tanh %350 : vector<8x32xf32>
    %352 = arith.mulf %347, %351 : vector<8x32xf32>
    %353 = arith.truncf %352 : vector<8x32xf32> to vector<8x32xbf16>
    %cst_80 = arith.constant dense<0.000000e+00> : vector<8x128xf32>
    %354 = tpu.matmul %353, %9, %cst_80 {dimension_numbers = #tpu.dot_dimension_numbers<[1], [0], [0], [1], [0, 0, 1, 1], [], []>} : vector<8x32xbf16>, vector<32x128xbf16>, vector<8x128xf32> -> vector<8x128xf32>
    %355 = arith.addf %333, %354 : vector<8x128xf32>
    %356 = arith.addf %355, %13 : vector<8x128xf32>
    %357 = arith.negf %356 : vector<8x128xf32>
    %358 = math.exp %357 : vector<8x128xf32>
    %cst_81 = arith.constant 1.000000e+00 : f32
    %359 = vector.broadcast %cst_81 : f32 to vector<8x128xf32>
    %360 = arith.addf %359, %358 : vector<8x128xf32>
    %361 = arith.divf %359, %360 : vector<8x128xf32>
    %362 = math.tanh %356 : vector<8x128xf32>
    %363 = vector.extract_strided_slice %361 {offsets = [0, 0], sizes = [8, 32], strides = [1, 1]} : vector<8x128xf32> to vector<8x32xf32>
    %364 = vector.extract_strided_slice %361 {offsets = [0, 32], sizes = [8, 32], strides = [1, 1]} : vector<8x128xf32> to vector<8x32xf32>
    %365 = vector.extract_strided_slice %362 {offsets = [0, 64], sizes = [8, 32], strides = [1, 1]} : vector<8x128xf32> to vector<8x32xf32>
    %366 = vector.extract_strided_slice %361 {offsets = [0, 96], sizes = [8, 32], strides = [1, 1]} : vector<8x128xf32> to vector<8x32xf32>
    %367 = arith.mulf %364, %324 : vector<8x32xf32>
    %368 = arith.mulf %363, %365 : vector<8x32xf32>
    %369 = arith.addf %367, %368 : vector<8x32xf32>
    %370 = math.tanh %369 : vector<8x32xf32>
    %371 = arith.mulf %366, %370 : vector<8x32xf32>
    %372 = vector.broadcast %331 : vector<8x1xf32> to vector<8x32xf32>
    %373 = arith.mulf %371, %372 : vector<8x32xf32>
    %374 = arith.addf %329, %373 : vector<8x32xf32>
    %c0_82 = arith.constant 0 : index
    %c0_83 = arith.constant 0 : index
    %c0_84 = arith.constant 0 : index
    %375 = vector.load %arg1[%c0_82, %c0_83, %c0_84] : memref<8x8x1xf32, #tpu.memory_space<vmem>>, vector<8x8x1xf32>
    %cst_85 = arith.constant dense<0.000000e+00> : vector<8x1xf32>
    %376 = vector.multi_reduction <add>, %375, %cst_85 [0] : vector<8x8x1xf32> to vector<8x1xf32>
    %377 = vector.broadcast %376 : vector<8x1xf32> to vector<8x32xf32>
    %378 = arith.divf %374, %377 : vector<8x32xf32>
    %c0_86 = arith.constant 0 : index
    %c0_87 = arith.constant 0 : index
    %379 = vector.load %arg8[%c0_86, %c0_87] : memref<8x32xf32, #tpu.memory_space<vmem>>, vector<8x32xf32>
    tpu.vector_store %arg8[%c0_86, %c0_87], %378 {strides = array<i32>} : memref<8x32xf32, #tpu.memory_space<vmem>>, vector<8x32xf32>,
    return
  }
}

</mosaic_0001>

<llo_original>
// kernel: encoder_lstm_for_road_emb.1
$region0: #{encoder_lstm_for_road_emb.1}
  #allocation0 [shape = 'u32[]', space=smem, size = 0x4, offset = 0x4, fixed_abs, tag = 'smem constant byte address 0x4 - core index']
  #allocation1 [shape = 'u32[144,128]{1,0:T(1,128)}', space=vmem, size = 0x12000, scoped, tag = 'internal scratch']
  #allocation2 [shape = 'f32[64,128]{1,0:T(8,128)}', space=vmem, size = 0x8000, scoped, tag = 'scratch operand']
  %s0 = inlined_call_operand.vmem [shape: f32[64,16], index: 0, kind: input, shape index: {}]
  %s1 = inlined_call_operand.vmem [shape: f32[8,8,1], index: 1, kind: input, shape index: {}]
  %s2 = inlined_call_operand.vmem [shape: bf16[16,128], index: 2, kind: input, shape index: {}]
  %s3 = inlined_call_operand.vmem [shape: bf16[32,128], index: 3, kind: input, shape index: {}]
  %s4 = inlined_call_operand.vmem [shape: f32[1,128], index: 4, kind: input, shape index: {}]
  %s5 = inlined_call_operand.vmem [shape: bf16[32,128], index: 5, kind: input, shape index: {}]
  %s6 = inlined_call_operand.vmem [shape: bf16[32,128], index: 6, kind: input, shape index: {}]
  %s7 = inlined_call_operand.vmem [shape: f32[1,128], index: 7, kind: input, shape index: {}]
  %s8 = inlined_call_operand.hbm [shape: f32[8,32], index: 8, kind: output, shape index: {}]
  %s9 = sld [smem:[#allocation0]]
  $region42: #{encoder_lstm_for_road_emb.1} parent=0
    _
  %s11 = ssub.s32 1, %s9
  %s12 = scalar_select 0, %s11, %s9
  $region1: #{encoder_lstm_for_road_emb.1} parent=0
    #allocation3 [shape = 'u8[4096]{0}', space=vmem, size = 0x1000, scoped, tag = 'output window, operand 0, single buffered']
    #allocation4 [shape = 's32[1]{0}', space=sflag, size = 0x4, scoped, tag = 'scoped memory for encoder_lstm_for_road_emb.1']
    %13 = vsyncpa [#allocation4], 0
    // Predicated region
    $region2: #{encoder_lstm_for_road_emb.1} parent=1 // pred_check
      _
    $region3: #{encoder_lstm_for_road_emb.1} parent=1 // pred_check_branch
      %15 = sbr.rel (0) target = $region5
    $region4: #{encoder_lstm_for_road_emb.1} parent=1 // pred_region
      _
    $region5: #{encoder_lstm_for_road_emb.1} parent=1 // pred_fallthru
      _
    // Predicated region
    $region6: #{encoder_lstm_for_road_emb.1} parent=1 // pred_check
      _
    $region7: #{encoder_lstm_for_road_emb.1} parent=1 // pred_check_branch
      %17 = sbr.rel (0) target = $region9
    $region8: #{encoder_lstm_for_road_emb.1} parent=1 // pred_region
      _
    $region9: #{encoder_lstm_for_road_emb.1} parent=1 // pred_fallthru
      _
    // Predicated region
    $region10: #{encoder_lstm_for_road_emb.1} parent=1 // pred_check
      _
    $region11: #{encoder_lstm_for_road_emb.1} parent=1 // pred_check_branch
      %19 = sbr.rel (0) target = $region13
    $region12: #{encoder_lstm_for_road_emb.1} parent=1 // pred_region
      _
    $region13: #{encoder_lstm_for_road_emb.1} parent=1 // pred_fallthru
      _
    // Predicated region
    $region14: #{encoder_lstm_for_road_emb.1} parent=1 // pred_check
      _
    $region15: #{encoder_lstm_for_road_emb.1} parent=1 // pred_check_branch
      %21 = sbr.rel (0) target = $region17
    $region16: #{encoder_lstm_for_road_emb.1} parent=1 // pred_region
      _
    $region17: #{encoder_lstm_for_road_emb.1} parent=1 // pred_fallthru
      _
    // Predicated region
    $region18: #{encoder_lstm_for_road_emb.1} parent=1 // pred_check
      _
    $region19: #{encoder_lstm_for_road_emb.1} parent=1 // pred_check_branch
      %23 = sbr.rel (0) target = $region21
    $region20: #{encoder_lstm_for_road_emb.1} parent=1 // pred_region
      _
    $region21: #{encoder_lstm_for_road_emb.1} parent=1 // pred_fallthru
      _
    // Predicated region
    $region22: #{encoder_lstm_for_road_emb.1} parent=1 // pred_check
      _
    $region23: #{encoder_lstm_for_road_emb.1} parent=1 // pred_check_branch
      %25 = sbr.rel (0) target = $region25
    $region24: #{encoder_lstm_for_road_emb.1} parent=1 // pred_region
      _
    $region25: #{encoder_lstm_for_road_emb.1} parent=1 // pred_fallthru
      _
    // Predicated region
    $region26: #{encoder_lstm_for_road_emb.1} parent=1 // pred_check
      _
    $region27: #{encoder_lstm_for_road_emb.1} parent=1 // pred_check_branch
      %27 = sbr.rel (0) target = $region29
    $region28: #{encoder_lstm_for_road_emb.1} parent=1 // pred_region
      _
    $region29: #{encoder_lstm_for_road_emb.1} parent=1 // pred_fallthru
      _
    // Predicated region
    $region30: #{encoder_lstm_for_road_emb.1} parent=1 // pred_check
      _
    $region31: #{encoder_lstm_for_road_emb.1} parent=1 // pred_check_branch
      %29 = sbr.rel (0) target = $region33
    $region32: #{encoder_lstm_for_road_emb.1} parent=1 // pred_region
      _
    $region33: #{encoder_lstm_for_road_emb.1} parent=1 // pred_fallthru
      _
    %v31 = vld [vmem:[%s2] sm:$0xf]
    %v32 = vld [vmem:[%s2 + $0x4] sm:$0xf]
    %v33 = vld [vmem:[%s0] sm:$0xff]
    %v34 = vld [vmem:[%s0 + $0x8] sm:$0xff]
    %v35 = vld [vmem:[%s0 + $0x10] sm:$0xff]
    %v36 = vld [vmem:[%s0 + $0x18] sm:$0xff]
    %v37 = vld [vmem:[%s0 + $0x20] sm:$0xff]
    %v38 = vld [vmem:[%s0 + $0x28] sm:$0xff]
    %v39 = vld [vmem:[%s0 + $0x30] sm:$0xff]
    %v40 = vld [vmem:[%s0 + $0x38] sm:$0xff]
    %v41 = vpack.c.bf16 %v34, %v33
    %v42 = vpack.c.bf16 %v36, %v35
    %v43 = vpack.c.bf16 %v38, %v37
    %v44 = vpack.c.bf16 %v40, %v39
    %v45 = vld [vmem:[%s4] sm:$0x1]
    %v47 = vlaneseq
    %v48 = vshrl.u32 %v47, 7
    %v49 = vsub.s32 0, %v48
    %v50 = vrot.slane %v45, %v49
    %v54 = vunpack.c.l.b16 %v31
    %v55 = vunpack.c.l.b16 %v32
    %v56 = vpack.c.b16 %v55, %v54
    %vm58 = vcmask 130048
    %v60 = vsel %vm58, %v41, 0
    %v63 = vsel %vm58, %v42, 0
    %v66 = vsel %vm58, %v43, 0
    %v69 = vsel %vm58, %v44, 0
    %71 = vmatprep.subr.bf16.mxu0 0
    %72 = vmatpush1.bf16.msra.mxu0 %v56
    %73 = vmatprep.subr.bf16.mxu0 0
    %74 = vmatpush1.bf16.msra.mxu0 0
    %75 = vmatprep.subr.bf16.mxu0 0
    %76 = vmatpush1.bf16.msra.mxu0 0
    %77 = vmatprep.subr.bf16.mxu0 0
    %78 = vmatpush1.bf16.msra.mxu0 0
    %79 = vmatprep.subr.bf16.mxu0 0
    %80 = vmatpush1.bf16.msra.mxu0 0
    %81 = vmatprep.subr.bf16.mxu0 0
    %82 = vmatpush1.bf16.msra.mxu0 0
    %83 = vmatprep.subr.bf16.mxu0 0
    %84 = vmatpush1.bf16.msra.mxu0 0
    %85 = vmatprep.subr.bf16.mxu0 0
    %86 = vmatpush1.bf16.msra.mxu0 0
    %87 = vmatprep.subr.bf16.mxu0 0
    %88 = vmatpush1.bf16.msra.mxu0 0
    %89 = vmatprep.subr.bf16.mxu0 0
    %90 = vmatpush1.bf16.msra.mxu0 0
    %91 = vmatprep.subr.bf16.mxu0 0
    %92 = vmatpush1.bf16.msra.mxu0 0
    %93 = vmatprep.subr.bf16.mxu0 0
    %94 = vmatpush1.bf16.msra.mxu0 0
    %95 = vmatprep.subr.bf16.mxu0 0
    %96 = vmatpush1.bf16.msra.mxu0 0
    %97 = vmatprep.subr.bf16.mxu0 0
    %98 = vmatpush1.bf16.msra.mxu0 0
    %99 = vmatprep.subr.bf16.mxu0 0
    %100 = vmatpush1.bf16.msra.mxu0 0
    %101 = vmatprep.subr.bf16.mxu0 0
    %102 = vmatpush1.bf16.msra.mxu0 0
    %103 = vmatprep.mubr.bf16.mxu0 0
    %104 = vmatmul.mubr.bf16.gmra.mrb[0].mxu0 %v60
    %v105 = vpop.f32.mrb[0].mxu0
    %v106 = vadd.f32 %v50, %v105
    %v107 = vpop.f32.mrb[0].mxu0
    %v108 = vpop.f32.mrb[0].mxu0
    %v109 = vadd.f32 %v50, %v108
    %v110 = vpop.f32.mrb[0].mxu0
    %111 = vmatprep.mubr.bf16.mxu0 0
    %112 = vmatmul.mubr.bf16.gmra.mrb[0].mxu0 %v63
    %v113 = vpop.f32.mrb[0].mxu0
    %v114 = vadd.f32 %v50, %v113
    %v115 = vpop.f32.mrb[0].mxu0
    %v116 = vpop.f32.mrb[0].mxu0
    %v117 = vadd.f32 %v50, %v116
    %v118 = vpop.f32.mrb[0].mxu0
    %119 = vmatprep.mubr.bf16.mxu0 0
    %120 = vmatmul.mubr.bf16.gmra.mrb[0].mxu0 %v66
    %v121 = vpop.f32.mrb[0].mxu0
    %v122 = vadd.f32 %v50, %v121
    %v123 = vpop.f32.mrb[0].mxu0
    %v124 = vpop.f32.mrb[0].mxu0
    %v125 = vadd.f32 %v50, %v124
    %v126 = vpop.f32.mrb[0].mxu0
    %127 = vmatprep.mubr.bf16.mxu0 0
    %128 = vmatmul.mubr.bf16.gmra.mrb[0].mxu0 %v69
    %v129 = vpop.f32.mrb[0].mxu0
    %v130 = vadd.f32 %v50, %v129
    %v131 = vpop.f32.mrb[0].mxu0
    %v132 = vpop.f32.mrb[0].mxu0
    %v133 = vadd.f32 %v50, %v132
    %v134 = vpop.f32.mrb[0].mxu0
    %135 = vdwg.mxu0
    %136 = vst [vmem:[#allocation2] sm:$0xff] %v106
    %137 = vst [vmem:[#allocation2 + $0x8] sm:$0xff] %v109
    %138 = vst [vmem:[#allocation2 + $0x10] sm:$0xff] %v114
    %139 = vst [vmem:[#allocation2 + $0x18] sm:$0xff] %v117
    %140 = vst [vmem:[#allocation2 + $0x20] sm:$0xff] %v122
    %141 = vst [vmem:[#allocation2 + $0x28] sm:$0xff] %v125
    %142 = vst [vmem:[#allocation2 + $0x30] sm:$0xff] %v130
    %143 = vst [vmem:[#allocation2 + $0x38] sm:$0xff] %v133
    %v144 = vld [vmem:[%s3] sm:$0xf]
    %v145 = vld [vmem:[%s3 + $0x4] sm:$0xf]
    %v146 = vld [vmem:[%s3 + $0x8] sm:$0xf]
    %v147 = vld [vmem:[%s3 + $0xc] sm:$0xf]
    %v148 = vld [vmem:[%s5] sm:$0xf]
    %v149 = vld [vmem:[%s5 + $0x4] sm:$0xf]
    %v150 = vld [vmem:[%s5 + $0x8] sm:$0xf]
    %v151 = vld [vmem:[%s5 + $0xc] sm:$0xf]
    %v152 = vld [vmem:[%s6] sm:$0xf]
    %v153 = vld [vmem:[%s6 + $0x4] sm:$0xf]
    %v154 = vld [vmem:[%s6 + $0x8] sm:$0xf]
    %v155 = vld [vmem:[%s6 + $0xc] sm:$0xf]
    %v156 = vld [vmem:[%s7] sm:$0x1]
    %v158 = vlaneseq
    %v159 = vshrl.u32 %v158, 7
    %v160 = vsub.s32 0, %v159
    %v161 = vrot.slane %v156, %v160
    %v163 = vld [vmem:[%s1] sm:$0xff]
    %v164 = vld [vmem:[#allocation2] sm:$0xff]
    %v169 = vunpack.c.l.b16 %v144
    %v170 = vunpack.c.l.b16 %v145
    %v171 = vunpack.c.l.b16 %v146
    %v172 = vunpack.c.l.b16 %v147
    %v173 = vpack.c.b16 %v170, %v169
    %v174 = vpack.c.b16 %v172, %v171
    %vm177 = vcmask 261120
    %v179 = vsel %vm177, 0, 0
    %181 = vmatprep.subr.bf16.mxu0 0
    %182 = vmatpush1.bf16.msra.mxu0 %v173
    %183 = vmatprep.subr.bf16.mxu0 0
    %184 = vmatpush1.bf16.msra.mxu0 %v174
    %185 = vmatprep.subr.bf16.mxu0 0
    %186 = vmatpush1.bf16.msra.mxu0 0
    %187 = vmatprep.subr.bf16.mxu0 0
    %188 = vmatpush1.bf16.msra.mxu0 0
    %189 = vmatprep.subr.bf16.mxu0 0
    %190 = vmatpush1.bf16.msra.mxu0 0
    %191 = vmatprep.subr.bf16.mxu0 0
    %192 = vmatpush1.bf16.msra.mxu0 0
    %193 = vmatprep.subr.bf16.mxu0 0
    %194 = vmatpush1.bf16.msra.mxu0 0
    %195 = vmatprep.subr.bf16.mxu0 0
    %196 = vmatpush1.bf16.msra.mxu0 0
    %197 = vmatprep.subr.bf16.mxu0 0
    %198 = vmatpush1.bf16.msra.mxu0 0
    %199 = vmatprep.subr.bf16.mxu0 0
    %200 = vmatpush1.bf16.msra.mxu0 0
    %201 = vmatprep.subr.bf16.mxu0 0
    %202 = vmatpush1.bf16.msra.mxu0 0
    %203 = vmatprep.subr.bf16.mxu0 0
    %204 = vmatpush1.bf16.msra.mxu0 0
    %205 = vmatprep.subr.bf16.mxu0 0
    %206 = vmatpush1.bf16.msra.mxu0 0
    %207 = vmatprep.subr.bf16.mxu0 0
    %208 = vmatpush1.bf16.msra.mxu0 0
    %209 = vmatprep.subr.bf16.mxu0 0
    %210 = vmatpush1.bf16.msra.mxu0 0
    %211 = vmatprep.subr.bf16.mxu0 0
    %212 = vmatpush1.bf16.msra.mxu0 0
    %213 = vmatprep.mubr.bf16.mxu0 0
    %214 = vmatmul.mubr.bf16.gmra.mrb[0].mxu0 %v179
    %v215 = vpop.f32.mrb[0].mxu0
    %v216 = vadd.f32 0.0, %v215
    %v217 = vpop.f32.mrb[0].mxu0
    %v218 = vpop.f32.mrb[0].mxu0
    %v219 = vpop.f32.mrb[0].mxu0
    %220 = vdwg.mxu0
    %v221 = vadd.f32 %v164, %v216
    %v222 = vxor.u32 %v221, 2147483648
    %v223 = vmul.f32 %v222, 1.442695
    %v224 = vpow.pop %v223
    %v225 = vadd.f32 %v224, 1.0
    %v226 = vrcp.pop %v225
    %v227 = vmul.f32 1.0, %v226
    %v228 = vtanh.pop %v221
    %v229 = vmul.f32 %v227, 0.0
    %231 = vrot.lane.b32.xlu0 %v228, 64
    %v232 = vpop.permute.xlu0 %231
    %v234 = vmul.f32 %v227, %v232
    %236 = vrot.lane.b32.xlu0 %v234, 32
    %v237 = vpop.permute.xlu0 %236
    %v239 = vadd.f32 %v229, %v237
    %v240 = vtanh.pop %v239
    %242 = vrot.lane.b32.xlu0 %v240, 64
    %v243 = vpop.permute.xlu0 %242
    %v245 = vmul.f32 %v227, %v243
    %v246 = vpack.c.bf16 %v245, %v245
    %248 = vrot.lane.b32.xlu0 %v246, 32
    %v249 = vpop.permute.xlu0 %248
    %v254 = vunpack.c.l.b16 %v148
    %v255 = vunpack.c.l.b16 %v149
    %v256 = vunpack.c.l.b16 %v150
    %v257 = vunpack.c.l.b16 %v151
    %v258 = vpack.c.b16 %v255, %v254
    %v259 = vpack.c.b16 %v257, %v256
    %v263 = vsel %vm177, %v249, 0
    %265 = vmatprep.subr.bf16.mxu0 0
    %266 = vmatpush1.bf16.msra.mxu0 %v258
    %267 = vmatprep.subr.bf16.mxu0 0
    %268 = vmatpush1.bf16.msra.mxu0 %v259
    %269 = vmatprep.subr.bf16.mxu0 0
    %270 = vmatpush1.bf16.msra.mxu0 0
    %271 = vmatprep.subr.bf16.mxu0 0
    %272 = vmatpush1.bf16.msra.mxu0 0
    %273 = vmatprep.subr.bf16.mxu0 0
    %274 = vmatpush1.bf16.msra.mxu0 0
    %275 = vmatprep.subr.bf16.mxu0 0
    %276 = vmatpush1.bf16.msra.mxu0 0
    %277 = vmatprep.subr.bf16.mxu0 0
    %278 = vmatpush1.bf16.msra.mxu0 0
    %279 = vmatprep.subr.bf16.mxu0 0
    %280 = vmatpush1.bf16.msra.mxu0 0
    %281 = vmatprep.subr.bf16.mxu0 0
    %282 = vmatpush1.bf16.msra.mxu0 0
    %283 = vmatprep.subr.bf16.mxu0 0
    %284 = vmatpush1.bf16.msra.mxu0 0
    %285 = vmatprep.subr.bf16.mxu0 0
    %286 = vmatpush1.bf16.msra.mxu0 0
    %287 = vmatprep.subr.bf16.mxu0 0
    %288 = vmatpush1.bf16.msra.mxu0 0
    %289 = vmatprep.subr.bf16.mxu0 0
    %290 = vmatpush1.bf16.msra.mxu0 0
    %291 = vmatprep.subr.bf16.mxu0 0
    %292 = vmatpush1.bf16.msra.mxu0 0
    %293 = vmatprep.subr.bf16.mxu0 0
    %294 = vmatpush1.bf16.msra.mxu0 0
    %295 = vmatprep.subr.bf16.mxu0 0
    %296 = vmatpush1.bf16.msra.mxu0 0
    %297 = vmatprep.mubr.bf16.mxu0 0
    %298 = vmatmul.mubr.bf16.gmra.mrb[0].mxu0 %v263
    %v299 = vpop.f32.mrb[0].mxu0
    %v300 = vadd.f32 0.0, %v299
    %v301 = vpop.f32.mrb[0].mxu0
    %v302 = vpop.f32.mrb[0].mxu0
    %v303 = vpop.f32.mrb[0].mxu0
    %304 = vdwg.mxu0
    %v309 = vunpack.c.l.b16 %v152
    %v310 = vunpack.c.l.b16 %v153
    %v311 = vunpack.c.l.b16 %v154
    %v312 = vunpack.c.l.b16 %v155
    %v313 = vpack.c.b16 %v310, %v309
    %v314 = vpack.c.b16 %v312, %v311
    %317 = vmatprep.subr.bf16.mxu0 0
    %318 = vmatpush1.bf16.msra.mxu0 %v313
    %319 = vmatprep.subr.bf16.mxu0 0
    %320 = vmatpush1.bf16.msra.mxu0 %v314
    %321 = vmatprep.subr.bf16.mxu0 0
    %322 = vmatpush1.bf16.msra.mxu0 0
    %323 = vmatprep.subr.bf16.mxu0 0
    %324 = vmatpush1.bf16.msra.mxu0 0
    %325 = vmatprep.subr.bf16.mxu0 0
    %326 = vmatpush1.bf16.msra.mxu0 0
    %327 = vmatprep.subr.bf16.mxu0 0
    %328 = vmatpush1.bf16.msra.mxu0 0
    %329 = vmatprep.subr.bf16.mxu0 0
    %330 = vmatpush1.bf16.msra.mxu0 0
    %331 = vmatprep.subr.bf16.mxu0 0
    %332 = vmatpush1.bf16.msra.mxu0 0
    %333 = vmatprep.subr.bf16.mxu0 0
    %334 = vmatpush1.bf16.msra.mxu0 0
    %335 = vmatprep.subr.bf16.mxu0 0
    %336 = vmatpush1.bf16.msra.mxu0 0
    %337 = vmatprep.subr.bf16.mxu0 0
    %338 = vmatpush1.bf16.msra.mxu0 0
    %339 = vmatprep.subr.bf16.mxu0 0
    %340 = vmatpush1.bf16.msra.mxu0 0
    %341 = vmatprep.subr.bf16.mxu0 0
    %342 = vmatpush1.bf16.msra.mxu0 0
    %343 = vmatprep.subr.bf16.mxu0 0
    %344 = vmatpush1.bf16.msra.mxu0 0
    %345 = vmatprep.subr.bf16.mxu0 0
    %346 = vmatpush1.bf16.msra.mxu0 0
    %347 = vmatprep.subr.bf16.mxu0 0
    %348 = vmatpush1.bf16.msra.mxu0 0
    %349 = vmatprep.mubr.bf16.mxu0 0
    %350 = vmatmul.mubr.bf16.gmra.mrb[0].mxu0 %v179
    %v351 = vpop.f32.mrb[0].mxu0
    %v352 = vadd.f32 %v300, %v351
    %v353 = vpop.f32.mrb[0].mxu0
    %v354 = vpop.f32.mrb[0].mxu0
    %v355 = vpop.f32.mrb[0].mxu0
    %356 = vdwg.mxu0
    %v357 = vadd.f32 %v352, %v161
    %v358 = vxor.u32 %v357, 2147483648
    %v359 = vmul.f32 %v358, 1.442695
    %v360 = vpow.pop %v359
    %v361 = vadd.f32 %v360, 1.0
    %v362 = vrcp.pop %v361
    %v363 = vmul.f32 1.0, %v362
    %v364 = vtanh.pop %v357
    %v365 = vmul.f32 %v363, 0.0
    %367 = vrot.lane.b32.xlu0 %v364, 64
    %v368 = vpop.permute.xlu0 %367
    %v370 = vmul.f32 %v363, %v368
    %372 = vrot.lane.b32.xlu0 %v370, 32
    %v373 = vpop.permute.xlu0 %372
    %v375 = vadd.f32 %v365, %v373
    %v376 = vtanh.pop %v375
    %378 = vrot.lane.b32.xlu0 %v376, 64
    %v379 = vpop.permute.xlu0 %378
    %v381 = vmul.f32 %v363, %v379
    %383 = vset.pattern.permute.xlu0 0
    %384 = vperm.xlu0 %383, %v163
    %v385 = vpop.permute.xlu0 %384
    %v387 = vmul.f32 %v381, %v385
    %v388 = vadd.f32 %v387, 0.0
    %s389 = scalar_lea.vmem %s1, 8
    %v390 = vld [vmem:[%s389] sm:$0xff]
    %v391 = vpack.c.bf16 %v381, %v381
    %v392 = vld [vmem:[#allocation2 + $0x8] sm:$0xff]
    %393 = vmatprep.subr.bf16.mxu0 0
    %394 = vmatpush1.bf16.msra.mxu0 %v173
    %395 = vmatprep.subr.bf16.mxu0 0
    %396 = vmatpush1.bf16.msra.mxu0 %v174
    %397 = vmatprep.subr.bf16.mxu0 0
    %398 = vmatpush1.bf16.msra.mxu0 0
    %399 = vmatprep.subr.bf16.mxu0 0
    %400 = vmatpush1.bf16.msra.mxu0 0
    %401 = vmatprep.subr.bf16.mxu0 0
    %402 = vmatpush1.bf16.msra.mxu0 0
    %403 = vmatprep.subr.bf16.mxu0 0
    %404 = vmatpush1.bf16.msra.mxu0 0
    %405 = vmatprep.subr.bf16.mxu0 0
    %406 = vmatpush1.bf16.msra.mxu0 0
    %407 = vmatprep.subr.bf16.mxu0 0
    %408 = vmatpush1.bf16.msra.mxu0 0
    %409 = vmatprep.subr.bf16.mxu0 0
    %410 = vmatpush1.bf16.msra.mxu0 0
    %411 = vmatprep.subr.bf16.mxu0 0
    %412 = vmatpush1.bf16.msra.mxu0 0
    %413 = vmatprep.subr.bf16.mxu0 0
    %414 = vmatpush1.bf16.msra.mxu0 0
    %415 = vmatprep.subr.bf16.mxu0 0
    %416 = vmatpush1.bf16.msra.mxu0 0
    %417 = vmatprep.subr.bf16.mxu0 0
    %418 = vmatpush1.bf16.msra.mxu0 0
    %419 = vmatprep.subr.bf16.mxu0 0
    %420 = vmatpush1.bf16.msra.mxu0 0
    %421 = vmatprep.subr.bf16.mxu0 0
    %422 = vmatpush1.bf16.msra.mxu0 0
    %423 = vmatprep.subr.bf16.mxu0 0
    %424 = vmatpush1.bf16.msra.mxu0 0
    %425 = vmatprep.mubr.bf16.mxu0 0
    %426 = vmatmul.mubr.bf16.gmra.mrb[0].mxu0 %v263
    %v427 = vpop.f32.mrb[0].mxu0
    %v428 = vadd.f32 0.0, %v427
    %v429 = vpop.f32.mrb[0].mxu0
    %v430 = vpop.f32.mrb[0].mxu0
    %v431 = vpop.f32.mrb[0].mxu0
    %432 = vdwg.mxu0
    %v433 = vadd.f32 %v392, %v428
    %v434 = vxor.u32 %v433, 2147483648
    %v435 = vmul.f32 %v434, 1.442695
    %v436 = vpow.pop %v435
    %v437 = vadd.f32 %v436, 1.0
    %v438 = vrcp.pop %v437
    %v439 = vmul.f32 1.0, %v438
    %v440 = vtanh.pop %v433
    %v441 = vmul.f32 %v439, %v239
    %443 = vrot.lane.b32.xlu0 %v440, 64
    %v444 = vpop.permute.xlu0 %443
    %v446 = vmul.f32 %v439, %v444
    %448 = vrot.lane.b32.xlu0 %v446, 32
    %v449 = vpop.permute.xlu0 %448
    %v451 = vadd.f32 %v441, %v449
    %v452 = vtanh.pop %v451
    %454 = vrot.lane.b32.xlu0 %v452, 64
    %v455 = vpop.permute.xlu0 %454
    %v457 = vmul.f32 %v439, %v455
    %v458 = vpack.c.bf16 %v457, %v457
    %460 = vrot.lane.b32.xlu0 %v458, 32
    %v461 = vpop.permute.xlu0 %460
    %v463 = vsel %vm177, %v461, 0
    %465 = vmatprep.subr.bf16.mxu0 0
    %466 = vmatpush1.bf16.msra.mxu0 %v258
    %467 = vmatprep.subr.bf16.mxu0 0
    %468 = vmatpush1.bf16.msra.mxu0 %v259
    %469 = vmatprep.subr.bf16.mxu0 0
    %470 = vmatpush1.bf16.msra.mxu0 0
    %471 = vmatprep.subr.bf16.mxu0 0
    %472 = vmatpush1.bf16.msra.mxu0 0
    %473 = vmatprep.subr.bf16.mxu0 0
    %474 = vmatpush1.bf16.msra.mxu0 0
    %475 = vmatprep.subr.bf16.mxu0 0
    %476 = vmatpush1.bf16.msra.mxu0 0
    %477 = vmatprep.subr.bf16.mxu0 0
    %478 = vmatpush1.bf16.msra.mxu0 0
    %479 = vmatprep.subr.bf16.mxu0 0
    %480 = vmatpush1.bf16.msra.mxu0 0
    %481 = vmatprep.subr.bf16.mxu0 0
    %482 = vmatpush1.bf16.msra.mxu0 0
    %483 = vmatprep.subr.bf16.mxu0 0
    %484 = vmatpush1.bf16.msra.mxu0 0
    %485 = vmatprep.subr.bf16.mxu0 0
    %486 = vmatpush1.bf16.msra.mxu0 0
    %487 = vmatprep.subr.bf16.mxu0 0
    %488 = vmatpush1.bf16.msra.mxu0 0
    %489 = vmatprep.subr.bf16.mxu0 0
    %490 = vmatpush1.bf16.msra.mxu0 0
    %491 = vmatprep.subr.bf16.mxu0 0
    %492 = vmatpush1.bf16.msra.mxu0 0
    %493 = vmatprep.subr.bf16.mxu0 0
    %494 = vmatpush1.bf16.msra.mxu0 0
    %495 = vmatprep.subr.bf16.mxu0 0
    %496 = vmatpush1.bf16.msra.mxu0 0
    %497 = vmatprep.mubr.bf16.mxu0 0
    %498 = vmatmul.mubr.bf16.gmra.mrb[0].mxu0 %v463
    %v499 = vpop.f32.mrb[0].mxu0
    %v500 = vadd.f32 0.0, %v499
    %v501 = vpop.f32.mrb[0].mxu0
    %v502 = vpop.f32.mrb[0].mxu0
    %v503 = vpop.f32.mrb[0].mxu0
    %504 = vdwg.mxu0
    %506 = vrot.lane.b32.xlu0 %v391, 32
    %v507 = vpop.permute.xlu0 %506
    %v509 = vsel %vm177, %v507, 0
    %511 = vmatprep.subr.bf16.mxu0 0
    %512 = vmatpush1.bf16.msra.mxu0 %v313
    %513 = vmatprep.subr.bf16.mxu0 0
    %514 = vmatpush1.bf16.msra.mxu0 %v314
    %515 = vmatprep.subr.bf16.mxu0 0
    %516 = vmatpush1.bf16.msra.mxu0 0
    %517 = vmatprep.subr.bf16.mxu0 0
    %518 = vmatpush1.bf16.msra.mxu0 0
    %519 = vmatprep.subr.bf16.mxu0 0
    %520 = vmatpush1.bf16.msra.mxu0 0
    %521 = vmatprep.subr.bf16.mxu0 0
    %522 = vmatpush1.bf16.msra.mxu0 0
    %523 = vmatprep.subr.bf16.mxu0 0
    %524 = vmatpush1.bf16.msra.mxu0 0
    %525 = vmatprep.subr.bf16.mxu0 0
    %526 = vmatpush1.bf16.msra.mxu0 0
    %527 = vmatprep.subr.bf16.mxu0 0
    %528 = vmatpush1.bf16.msra.mxu0 0
    %529 = vmatprep.subr.bf16.mxu0 0
    %530 = vmatpush1.bf16.msra.mxu0 0
    %531 = vmatprep.subr.bf16.mxu0 0
    %532 = vmatpush1.bf16.msra.mxu0 0
    %533 = vmatprep.subr.bf16.mxu0 0
    %534 = vmatpush1.bf16.msra.mxu0 0
    %535 = vmatprep.subr.bf16.mxu0 0
    %536 = vmatpush1.bf16.msra.mxu0 0
    %537 = vmatprep.subr.bf16.mxu0 0
    %538 = vmatpush1.bf16.msra.mxu0 0
    %539 = vmatprep.subr.bf16.mxu0 0
    %540 = vmatpush1.bf16.msra.mxu0 0
    %541 = vmatprep.subr.bf16.mxu0 0
    %542 = vmatpush1.bf16.msra.mxu0 0
    %543 = vmatprep.mubr.bf16.mxu0 0
    %544 = vmatmul.mubr.bf16.gmra.mrb[0].mxu0 %v509
    %v545 = vpop.f32.mrb[0].mxu0
    %v546 = vadd.f32 %v500, %v545
    %v547 = vpop.f32.mrb[0].mxu0
    %v548 = vpop.f32.mrb[0].mxu0
    %v549 = vpop.f32.mrb[0].mxu0
    %550 = vdwg.mxu0
    %v551 = vadd.f32 %v546, %v161
    %v552 = vxor.u32 %v551, 2147483648
    %v553 = vmul.f32 %v552, 1.442695
    %v554 = vpow.pop %v553
    %v555 = vadd.f32 %v554, 1.0
    %v556 = vrcp.pop %v555
    %v557 = vmul.f32 1.0, %v556
    %v558 = vtanh.pop %v551
    %v559 = vmul.f32 %v557, %v375
    %561 = vrot.lane.b32.xlu0 %v558, 64
    %v562 = vpop.permute.xlu0 %561
    %v564 = vmul.f32 %v557, %v562
    %566 = vrot.lane.b32.xlu0 %v564, 32
    %v567 = vpop.permute.xlu0 %566
    %v569 = vadd.f32 %v559, %v567
    %v570 = vtanh.pop %v569
    %572 = vrot.lane.b32.xlu0 %v570, 64
    %v573 = vpop.permute.xlu0 %572
    %v575 = vmul.f32 %v557, %v573
    %577 = vset.pattern.permute.xlu0 0
    %578 = vperm.xlu0 %577, %v390
    %v579 = vpop.permute.xlu0 %578
    %v581 = vmul.f32 %v575, %v579
    %v582 = vadd.f32 %v388, %v581
    %s583 = scalar_lea.vmem %s1, 16
    %v584 = vld [vmem:[%s583] sm:$0xff]
    %v585 = vpack.c.bf16 %v575, %v575
    %v586 = vld [vmem:[#allocation2 + $0x10] sm:$0xff]
    %587 = vmatprep.subr.bf16.mxu0 0
    %588 = vmatpush1.bf16.msra.mxu0 %v173
    %589 = vmatprep.subr.bf16.mxu0 0
    %590 = vmatpush1.bf16.msra.mxu0 %v174
    %591 = vmatprep.subr.bf16.mxu0 0
    %592 = vmatpush1.bf16.msra.mxu0 0
    %593 = vmatprep.subr.bf16.mxu0 0
    %594 = vmatpush1.bf16.msra.mxu0 0
    %595 = vmatprep.subr.bf16.mxu0 0
    %596 = vmatpush1.bf16.msra.mxu0 0
    %597 = vmatprep.subr.bf16.mxu0 0
    %598 = vmatpush1.bf16.msra.mxu0 0
    %599 = vmatprep.subr.bf16.mxu0 0
    %600 = vmatpush1.bf16.msra.mxu0 0
    %601 = vmatprep.subr.bf16.mxu0 0
    %602 = vmatpush1.bf16.msra.mxu0 0
    %603 = vmatprep.subr.bf16.mxu0 0
    %604 = vmatpush1.bf16.msra.mxu0 0
    %605 = vmatprep.subr.bf16.mxu0 0
    %606 = vmatpush1.bf16.msra.mxu0 0
    %607 = vmatprep.subr.bf16.mxu0 0
    %608 = vmatpush1.bf16.msra.mxu0 0
    %609 = vmatprep.subr.bf16.mxu0 0
    %610 = vmatpush1.bf16.msra.mxu0 0
    %611 = vmatprep.subr.bf16.mxu0 0
    %612 = vmatpush1.bf16.msra.mxu0 0
    %613 = vmatprep.subr.bf16.mxu0 0
    %614 = vmatpush1.bf16.msra.mxu0 0
    %615 = vmatprep.subr.bf16.mxu0 0
    %616 = vmatpush1.bf16.msra.mxu0 0
    %617 = vmatprep.subr.bf16.mxu0 0
    %618 = vmatpush1.bf16.msra.mxu0 0
    %619 = vmatprep.mubr.bf16.mxu0 0
    %620 = vmatmul.mubr.bf16.gmra.mrb[0].mxu0 %v463
    %v621 = vpop.f32.mrb[0].mxu0
    %v622 = vadd.f32 0.0, %v621
    %v623 = vpop.f32.mrb[0].mxu0
    %v624 = vpop.f32.mrb[0].mxu0
    %v625 = vpop.f32.mrb[0].mxu0
    %626 = vdwg.mxu0
    %v627 = vadd.f32 %v586, %v622
    %v628 = vxor.u32 %v627, 2147483648
    %v629 = vmul.f32 %v628, 1.442695
    %v630 = vpow.pop %v629
    %v631 = vadd.f32 %v630, 1.0
    %v632 = vrcp.pop %v631
    %v633 = vmul.f32 1.0, %v632
    %v634 = vtanh.pop %v627
    %v635 = vmul.f32 %v633, %v451
    %637 = vrot.lane.b32.xlu0 %v634, 64
    %v638 = vpop.permute.xlu0 %637
    %v640 = vmul.f32 %v633, %v638
    %642 = vrot.lane.b32.xlu0 %v640, 32
    %v643 = vpop.permute.xlu0 %642
    %v645 = vadd.f32 %v635, %v643
    %v646 = vtanh.pop %v645
    %648 = vrot.lane.b32.xlu0 %v646, 64
    %v649 = vpop.permute.xlu0 %648
    %v651 = vmul.f32 %v633, %v649
    %v652 = vpack.c.bf16 %v651, %v651
    %654 = vrot.lane.b32.xlu0 %v652, 32
    %v655 = vpop.permute.xlu0 %654
    %v657 = vsel %vm177, %v655, 0
    %659 = vmatprep.subr.bf16.mxu0 0
    %660 = vmatpush1.bf16.msra.mxu0 %v258
    %661 = vmatprep.subr.bf16.mxu0 0
    %662 = vmatpush1.bf16.msra.mxu0 %v259
    %663 = vmatprep.subr.bf16.mxu0 0
    %664 = vmatpush1.bf16.msra.mxu0 0
    %665 = vmatprep.subr.bf16.mxu0 0
    %666 = vmatpush1.bf16.msra.mxu0 0
    %667 = vmatprep.subr.bf16.mxu0 0
    %668 = vmatpush1.bf16.msra.mxu0 0
    %669 = vmatprep.subr.bf16.mxu0 0
    %670 = vmatpush1.bf16.msra.mxu0 0
    %671 = vmatprep.subr.bf16.mxu0 0
    %672 = vmatpush1.bf16.msra.mxu0 0
    %673 = vmatprep.subr.bf16.mxu0 0
    %674 = vmatpush1.bf16.msra.mxu0 0
    %675 = vmatprep.subr.bf16.mxu0 0
    %676 = vmatpush1.bf16.msra.mxu0 0
    %677 = vmatprep.subr.bf16.mxu0 0
    %678 = vmatpush1.bf16.msra.mxu0 0
    %679 = vmatprep.subr.bf16.mxu0 0
    %680 = vmatpush1.bf16.msra.mxu0 0
    %681 = vmatprep.subr.bf16.mxu0 0
    %682 = vmatpush1.bf16.msra.mxu0 0
    %683 = vmatprep.subr.bf16.mxu0 0
    %684 = vmatpush1.bf16.msra.mxu0 0
    %685 = vmatprep.subr.bf16.mxu0 0
    %686 = vmatpush1.bf16.msra.mxu0 0
    %687 = vmatprep.subr.bf16.mxu0 0
    %688 = vmatpush1.bf16.msra.mxu0 0
    %689 = vmatprep.subr.bf16.mxu0 0
    %690 = vmatpush1.bf16.msra.mxu0 0
    %691 = vmatprep.mubr.bf16.mxu0 0
    %692 = vmatmul.mubr.bf16.gmra.mrb[0].mxu0 %v657
    %v693 = vpop.f32.mrb[0].mxu0
    %v694 = vadd.f32 0.0, %v693
    %v695 = vpop.f32.mrb[0].mxu0
    %v696 = vpop.f32.mrb[0].mxu0
    %v697 = vpop.f32.mrb[0].mxu0
    %698 = vdwg.mxu0
    %700 = vrot.lane.b32.xlu0 %v585, 32
    %v701 = vpop.permute.xlu0 %700
    %v703 = vsel %vm177, %v701, 0
    %705 = vmatprep.subr.bf16.mxu0 0
    %706 = vmatpush1.bf16.msra.mxu0 %v313
    %707 = vmatprep.subr.bf16.mxu0 0
    %708 = vmatpush1.bf16.msra.mxu0 %v314
    %709 = vmatprep.subr.bf16.mxu0 0
    %710 = vmatpush1.bf16.msra.mxu0 0
    %711 = vmatprep.subr.bf16.mxu0 0
    %712 = vmatpush1.bf16.msra.mxu0 0
    %713 = vmatprep.subr.bf16.mxu0 0
    %714 = vmatpush1.bf16.msra.mxu0 0
    %715 = vmatprep.subr.bf16.mxu0 0
    %716 = vmatpush1.bf16.msra.mxu0 0
    %717 = vmatprep.subr.bf16.mxu0 0
    %718 = vmatpush1.bf16.msra.mxu0 0
    %719 = vmatprep.subr.bf16.mxu0 0
    %720 = vmatpush1.bf16.msra.mxu0 0
    %721 = vmatprep.subr.bf16.mxu0 0
    %722 = vmatpush1.bf16.msra.mxu0 0
    %723 = vmatprep.subr.bf16.mxu0 0
    %724 = vmatpush1.bf16.msra.mxu0 0
    %725 = vmatprep.subr.bf16.mxu0 0
    %726 = vmatpush1.bf16.msra.mxu0 0
    %727 = vmatprep.subr.bf16.mxu0 0
    %728 = vmatpush1.bf16.msra.mxu0 0
    %729 = vmatprep.subr.bf16.mxu0 0
    %730 = vmatpush1.bf16.msra.mxu0 0
    %731 = vmatprep.subr.bf16.mxu0 0
    %732 = vmatpush1.bf16.msra.mxu0 0
    %733 = vmatprep.subr.bf16.mxu0 0
    %734 = vmatpush1.bf16.msra.mxu0 0
    %735 = vmatprep.subr.bf16.mxu0 0
    %736 = vmatpush1.bf16.msra.mxu0 0
    %737 = vmatprep.mubr.bf16.mxu0 0
    %738 = vmatmul.mubr.bf16.gmra.mrb[0].mxu0 %v703
    %v739 = vpop.f32.mrb[0].mxu0
    %v740 = vadd.f32 %v694, %v739
    %v741 = vpop.f32.mrb[0].mxu0
    %v742 = vpop.f32.mrb[0].mxu0
    %v743 = vpop.f32.mrb[0].mxu0
    %744 = vdwg.mxu0
    %v745 = vadd.f32 %v740, %v161
    %v746 = vxor.u32 %v745, 2147483648
    %v747 = vmul.f32 %v746, 1.442695
    %v748 = vpow.pop %v747
    %v749 = vadd.f32 %v748, 1.0
    %v750 = vrcp.pop %v749
    %v751 = vmul.f32 1.0, %v750
    %v752 = vtanh.pop %v745
    %v753 = vmul.f32 %v751, %v569
    %755 = vrot.lane.b32.xlu0 %v752, 64
    %v756 = vpop.permute.xlu0 %755
    %v758 = vmul.f32 %v751, %v756
    %760 = vrot.lane.b32.xlu0 %v758, 32
    %v761 = vpop.permute.xlu0 %760
    %v763 = vadd.f32 %v753, %v761
    %v764 = vtanh.pop %v763
    %766 = vrot.lane.b32.xlu0 %v764, 64
    %v767 = vpop.permute.xlu0 %766
    %v769 = vmul.f32 %v751, %v767
    %771 = vset.pattern.permute.xlu0 0
    %772 = vperm.xlu0 %771, %v584
    %v773 = vpop.permute.xlu0 %772
    %v775 = vmul.f32 %v769, %v773
    %v776 = vadd.f32 %v582, %v775
    %s777 = scalar_lea.vmem %s1, 24
    %v778 = vld [vmem:[%s777] sm:$0xff]
    %v779 = vpack.c.bf16 %v769, %v769
    %v780 = vld [vmem:[#allocation2 + $0x18] sm:$0xff]
    %781 = vmatprep.subr.bf16.mxu0 0
    %782 = vmatpush1.bf16.msra.mxu0 %v173
    %783 = vmatprep.subr.bf16.mxu0 0
    %784 = vmatpush1.bf16.msra.mxu0 %v174
    %785 = vmatprep.subr.bf16.mxu0 0
    %786 = vmatpush1.bf16.msra.mxu0 0
    %787 = vmatprep.subr.bf16.mxu0 0
    %788 = vmatpush1.bf16.msra.mxu0 0
    %789 = vmatprep.subr.bf16.mxu0 0
    %790 = vmatpush1.bf16.msra.mxu0 0
    %791 = vmatprep.subr.bf16.mxu0 0
    %792 = vmatpush1.bf16.msra.mxu0 0
    %793 = vmatprep.subr.bf16.mxu0 0
    %794 = vmatpush1.bf16.msra.mxu0 0
    %795 = vmatprep.subr.bf16.mxu0 0
    %796 = vmatpush1.bf16.msra.mxu0 0
    %797 = vmatprep.subr.bf16.mxu0 0
    %798 = vmatpush1.bf16.msra.mxu0 0
    %799 = vmatprep.subr.bf16.mxu0 0
    %800 = vmatpush1.bf16.msra.mxu0 0
    %801 = vmatprep.subr.bf16.mxu0 0
    %802 = vmatpush1.bf16.msra.mxu0 0
    %803 = vmatprep.subr.bf16.mxu0 0
    %804 = vmatpush1.bf16.msra.mxu0 0
    %805 = vmatprep.subr.bf16.mxu0 0
    %806 = vmatpush1.bf16.msra.mxu0 0
    %807 = vmatprep.subr.bf16.mxu0 0
    %808 = vmatpush1.bf16.msra.mxu0 0
    %809 = vmatprep.subr.bf16.mxu0 0
    %810 = vmatpush1.bf16.msra.mxu0 0
    %811 = vmatprep.subr.bf16.mxu0 0
    %812 = vmatpush1.bf16.msra.mxu0 0
    %813 = vmatprep.mubr.bf16.mxu0 0
    %814 = vmatmul.mubr.bf16.gmra.mrb[0].mxu0 %v657
    %v815 = vpop.f32.mrb[0].mxu0
    %v816 = vadd.f32 0.0, %v815
    %v817 = vpop.f32.mrb[0].mxu0
    %v818 = vpop.f32.mrb[0].mxu0
    %v819 = vpop.f32.mrb[0].mxu0
    %820 = vdwg.mxu0
    %v821 = vadd.f32 %v780, %v816
    %v822 = vxor.u32 %v821, 2147483648
    %v823 = vmul.f32 %v822, 1.442695
    %v824 = vpow.pop %v823
    %v825 = vadd.f32 %v824, 1.0
    %v826 = vrcp.pop %v825
    %v827 = vmul.f32 1.0, %v826
    %v828 = vtanh.pop %v821
    %v829 = vmul.f32 %v827, %v645
    %831 = vrot.lane.b32.xlu0 %v828, 64
    %v832 = vpop.permute.xlu0 %831
    %v834 = vmul.f32 %v827, %v832
    %836 = vrot.lane.b32.xlu0 %v834, 32
    %v837 = vpop.permute.xlu0 %836
    %v839 = vadd.f32 %v829, %v837
    %v840 = vtanh.pop %v839
    %842 = vrot.lane.b32.xlu0 %v840, 64
    %v843 = vpop.permute.xlu0 %842
    %v845 = vmul.f32 %v827, %v843
    %v846 = vpack.c.bf16 %v845, %v845
    %848 = vrot.lane.b32.xlu0 %v846, 32
    %v849 = vpop.permute.xlu0 %848
    %v851 = vsel %vm177, %v849, 0
    %853 = vmatprep.subr.bf16.mxu0 0
    %854 = vmatpush1.bf16.msra.mxu0 %v258
    %855 = vmatprep.subr.bf16.mxu0 0
    %856 = vmatpush1.bf16.msra.mxu0 %v259
    %857 = vmatprep.subr.bf16.mxu0 0
    %858 = vmatpush1.bf16.msra.mxu0 0
    %859 = vmatprep.subr.bf16.mxu0 0
    %860 = vmatpush1.bf16.msra.mxu0 0
    %861 = vmatprep.subr.bf16.mxu0 0
    %862 = vmatpush1.bf16.msra.mxu0 0
    %863 = vmatprep.subr.bf16.mxu0 0
    %864 = vmatpush1.bf16.msra.mxu0 0
    %865 = vmatprep.subr.bf16.mxu0 0
    %866 = vmatpush1.bf16.msra.mxu0 0
    %867 = vmatprep.subr.bf16.mxu0 0
    %868 = vmatpush1.bf16.msra.mxu0 0
    %869 = vmatprep.subr.bf16.mxu0 0
    %870 = vmatpush1.bf16.msra.mxu0 0
    %871 = vmatprep.subr.bf16.mxu0 0
    %872 = vmatpush1.bf16.msra.mxu0 0
    %873 = vmatprep.subr.bf16.mxu0 0
    %874 = vmatpush1.bf16.msra.mxu0 0
    %875 = vmatprep.subr.bf16.mxu0 0
    %876 = vmatpush1.bf16.msra.mxu0 0
    %877 = vmatprep.subr.bf16.mxu0 0
    %878 = vmatpush1.bf16.msra.mxu0 0
    %879 = vmatprep.subr.bf16.mxu0 0
    %880 = vmatpush1.bf16.msra.mxu0 0
    %881 = vmatprep.subr.bf16.mxu0 0
    %882 = vmatpush1.bf16.msra.mxu0 0
    %883 = vmatprep.subr.bf16.mxu0 0
    %884 = vmatpush1.bf16.msra.mxu0 0
    %885 = vmatprep.mubr.bf16.mxu0 0
    %886 = vmatmul.mubr.bf16.gmra.mrb[0].mxu0 %v851
    %v887 = vpop.f32.mrb[0].mxu0
    %v888 = vadd.f32 0.0, %v887
    %v889 = vpop.f32.mrb[0].mxu0
    %v890 = vpop.f32.mrb[0].mxu0
    %v891 = vpop.f32.mrb[0].mxu0
    %892 = vdwg.mxu0
    %894 = vrot.lane.b32.xlu0 %v779, 32
    %v895 = vpop.permute.xlu0 %894
    %v897 = vsel %vm177, %v895, 0
    %899 = vmatprep.subr.bf16.mxu0 0
    %900 = vmatpush1.bf16.msra.mxu0 %v313
    %901 = vmatprep.subr.bf16.mxu0 0
    %902 = vmatpush1.bf16.msra.mxu0 %v314
    %903 = vmatprep.subr.bf16.mxu0 0
    %904 = vmatpush1.bf16.msra.mxu0 0
    %905 = vmatprep.subr.bf16.mxu0 0
    %906 = vmatpush1.bf16.msra.mxu0 0
    %907 = vmatprep.subr.bf16.mxu0 0
    %908 = vmatpush1.bf16.msra.mxu0 0
    %909 = vmatprep.subr.bf16.mxu0 0
    %910 = vmatpush1.bf16.msra.mxu0 0
    %911 = vmatprep.subr.bf16.mxu0 0
    %912 = vmatpush1.bf16.msra.mxu0 0
    %913 = vmatprep.subr.bf16.mxu0 0
    %914 = vmatpush1.bf16.msra.mxu0 0
    %915 = vmatprep.subr.bf16.mxu0 0
    %916 = vmatpush1.bf16.msra.mxu0 0
    %917 = vmatprep.subr.bf16.mxu0 0
    %918 = vmatpush1.bf16.msra.mxu0 0
    %919 = vmatprep.subr.bf16.mxu0 0
    %920 = vmatpush1.bf16.msra.mxu0 0
    %921 = vmatprep.subr.bf16.mxu0 0
    %922 = vmatpush1.bf16.msra.mxu0 0
    %923 = vmatprep.subr.bf16.mxu0 0
    %924 = vmatpush1.bf16.msra.mxu0 0
    %925 = vmatprep.subr.bf16.mxu0 0
    %926 = vmatpush1.bf16.msra.mxu0 0
    %927 = vmatprep.subr.bf16.mxu0 0
    %928 = vmatpush1.bf16.msra.mxu0 0
    %929 = vmatprep.subr.bf16.mxu0 0
    %930 = vmatpush1.bf16.msra.mxu0 0
    %931 = vmatprep.mubr.bf16.mxu0 0
    %932 = vmatmul.mubr.bf16.gmra.mrb[0].mxu0 %v897
    %v933 = vpop.f32.mrb[0].mxu0
    %v934 = vadd.f32 %v888, %v933
    %v935 = vpop.f32.mrb[0].mxu0
    %v936 = vpop.f32.mrb[0].mxu0
    %v937 = vpop.f32.mrb[0].mxu0
    %938 = vdwg.mxu0
    %v939 = vadd.f32 %v934, %v161
    %v940 = vxor.u32 %v939, 2147483648
    %v941 = vmul.f32 %v940, 1.442695
    %v942 = vpow.pop %v941
    %v943 = vadd.f32 %v942, 1.0
    %v944 = vrcp.pop %v943
    %v945 = vmul.f32 1.0, %v944
    %v946 = vtanh.pop %v939
    %v947 = vmul.f32 %v945, %v763
    %949 = vrot.lane.b32.xlu0 %v946, 64
    %v950 = vpop.permute.xlu0 %949
    %v952 = vmul.f32 %v945, %v950
    %954 = vrot.lane.b32.xlu0 %v952, 32
    %v955 = vpop.permute.xlu0 %954
    %v957 = vadd.f32 %v947, %v955
    %v958 = vtanh.pop %v957
    %960 = vrot.lane.b32.xlu0 %v958, 64
    %v961 = vpop.permute.xlu0 %960
    %v963 = vmul.f32 %v945, %v961
    %965 = vset.pattern.permute.xlu0 0
    %966 = vperm.xlu0 %965, %v778
    %v967 = vpop.permute.xlu0 %966
    %v969 = vmul.f32 %v963, %v967
    %v970 = vadd.f32 %v776, %v969
    %s971 = scalar_lea.vmem %s1, 32
    %v972 = vld [vmem:[%s971] sm:$0xff]
    %v973 = vpack.c.bf16 %v963, %v963
    %v974 = vld [vmem:[#allocation2 + $0x20] sm:$0xff]
    %975 = vmatprep.subr.bf16.mxu0 0
    %976 = vmatpush1.bf16.msra.mxu0 %v173
    %977 = vmatprep.subr.bf16.mxu0 0
    %978 = vmatpush1.bf16.msra.mxu0 %v174
    %979 = vmatprep.subr.bf16.mxu0 0
    %980 = vmatpush1.bf16.msra.mxu0 0
    %981 = vmatprep.subr.bf16.mxu0 0
    %982 = vmatpush1.bf16.msra.mxu0 0
    %983 = vmatprep.subr.bf16.mxu0 0
    %984 = vmatpush1.bf16.msra.mxu0 0
    %985 = vmatprep.subr.bf16.mxu0 0
    %986 = vmatpush1.bf16.msra.mxu0 0
    %987 = vmatprep.subr.bf16.mxu0 0
    %988 = vmatpush1.bf16.msra.mxu0 0
    %989 = vmatprep.subr.bf16.mxu0 0
    %990 = vmatpush1.bf16.msra.mxu0 0
    %991 = vmatprep.subr.bf16.mxu0 0
    %992 = vmatpush1.bf16.msra.mxu0 0
    %993 = vmatprep.subr.bf16.mxu0 0
    %994 = vmatpush1.bf16.msra.mxu0 0
    %995 = vmatprep.subr.bf16.mxu0 0
    %996 = vmatpush1.bf16.msra.mxu0 0
    %997 = vmatprep.subr.bf16.mxu0 0
    %998 = vmatpush1.bf16.msra.mxu0 0
    %999 = vmatprep.subr.bf16.mxu0 0
    %1000 = vmatpush1.bf16.msra.mxu0 0
    %1001 = vmatprep.subr.bf16.mxu0 0
    %1002 = vmatpush1.bf16.msra.mxu0 0
    %1003 = vmatprep.subr.bf16.mxu0 0
    %1004 = vmatpush1.bf16.msra.mxu0 0
    %1005 = vmatprep.subr.bf16.mxu0 0
    %1006 = vmatpush1.bf16.msra.mxu0 0
    %1007 = vmatprep.mubr.bf16.mxu0 0
    %1008 = vmatmul.mubr.bf16.gmra.mrb[0].mxu0 %v851
    %v1009 = vpop.f32.mrb[0].mxu0
    %v1010 = vadd.f32 0.0, %v1009
    %v1011 = vpop.f32.mrb[0].mxu0
    %v1012 = vpop.f32.mrb[0].mxu0
    %v1013 = vpop.f32.mrb[0].mxu0
    %1014 = vdwg.mxu0
    %v1015 = vadd.f32 %v974, %v1010
    %v1016 = vxor.u32 %v1015, 2147483648
    %v1017 = vmul.f32 %v1016, 1.442695
    %v1018 = vpow.pop %v1017
    %v1019 = vadd.f32 %v1018, 1.0
    %v1020 = vrcp.pop %v1019
    %v1021 = vmul.f32 1.0, %v1020
    %v1022 = vtanh.pop %v1015
    %v1023 = vmul.f32 %v1021, %v839
    %1025 = vrot.lane.b32.xlu0 %v1022, 64
    %v1026 = vpop.permute.xlu0 %1025
    %v1028 = vmul.f32 %v1021, %v1026
    %1030 = vrot.lane.b32.xlu0 %v1028, 32
    %v1031 = vpop.permute.xlu0 %1030
    %v1033 = vadd.f32 %v1023, %v1031
    %v1034 = vtanh.pop %v1033
    %1036 = vrot.lane.b32.xlu0 %v1034, 64
    %v1037 = vpop.permute.xlu0 %1036
    %v1039 = vmul.f32 %v1021, %v1037
    %v1040 = vpack.c.bf16 %v1039, %v1039
    %1042 = vrot.lane.b32.xlu0 %v1040, 32
    %v1043 = vpop.permute.xlu0 %1042
    %v1045 = vsel %vm177, %v1043, 0
    %1047 = vmatprep.subr.bf16.mxu0 0
    %1048 = vmatpush1.bf16.msra.mxu0 %v258
    %1049 = vmatprep.subr.bf16.mxu0 0
    %1050 = vmatpush1.bf16.msra.mxu0 %v259
    %1051 = vmatprep.subr.bf16.mxu0 0
    %1052 = vmatpush1.bf16.msra.mxu0 0
    %1053 = vmatprep.subr.bf16.mxu0 0
    %1054 = vmatpush1.bf16.msra.mxu0 0
    %1055 = vmatprep.subr.bf16.mxu0 0
    %1056 = vmatpush1.bf16.msra.mxu0 0
    %1057 = vmatprep.subr.bf16.mxu0 0
    %1058 = vmatpush1.bf16.msra.mxu0 0
    %1059 = vmatprep.subr.bf16.mxu0 0
    %1060 = vmatpush1.bf16.msra.mxu0 0
    %1061 = vmatprep.subr.bf16.mxu0 0
    %1062 = vmatpush1.bf16.msra.mxu0 0
    %1063 = vmatprep.subr.bf16.mxu0 0
    %1064 = vmatpush1.bf16.msra.mxu0 0
    %1065 = vmatprep.subr.bf16.mxu0 0
    %1066 = vmatpush1.bf16.msra.mxu0 0
    %1067 = vmatprep.subr.bf16.mxu0 0
    %1068 = vmatpush1.bf16.msra.mxu0 0
    %1069 = vmatprep.subr.bf16.mxu0 0
    %1070 = vmatpush1.bf16.msra.mxu0 0
    %1071 = vmatprep.subr.bf16.mxu0 0
    %1072 = vmatpush1.bf16.msra.mxu0 0
    %1073 = vmatprep.subr.bf16.mxu0 0
    %1074 = vmatpush1.bf16.msra.mxu0 0
    %1075 = vmatprep.subr.bf16.mxu0 0
    %1076 = vmatpush1.bf16.msra.mxu0 0
    %1077 = vmatprep.subr.bf16.mxu0 0
    %1078 = vmatpush1.bf16.msra.mxu0 0
    %1079 = vmatprep.mubr.bf16.mxu0 0
    %1080 = vmatmul.mubr.bf16.gmra.mrb[0].mxu0 %v1045
    %v1081 = vpop.f32.mrb[0].mxu0
    %v1082 = vadd.f32 0.0, %v1081
    %v1083 = vpop.f32.mrb[0].mxu0
    %v1084 = vpop.f32.mrb[0].mxu0
    %v1085 = vpop.f32.mrb[0].mxu0
    %1086 = vdwg.mxu0
    %1088 = vrot.lane.b32.xlu0 %v973, 32
    %v1089 = vpop.permute.xlu0 %1088
    %v1091 = vsel %vm177, %v1089, 0
    %1093 = vmatprep.subr.bf16.mxu0 0
    %1094 = vmatpush1.bf16.msra.mxu0 %v313
    %1095 = vmatprep.subr.bf16.mxu0 0
    %1096 = vmatpush1.bf16.msra.mxu0 %v314
    %1097 = vmatprep.subr.bf16.mxu0 0
    %1098 = vmatpush1.bf16.msra.mxu0 0
    %1099 = vmatprep.subr.bf16.mxu0 0
    %1100 = vmatpush1.bf16.msra.mxu0 0
    %1101 = vmatprep.subr.bf16.mxu0 0
    %1102 = vmatpush1.bf16.msra.mxu0 0
    %1103 = vmatprep.subr.bf16.mxu0 0
    %1104 = vmatpush1.bf16.msra.mxu0 0
    %1105 = vmatprep.subr.bf16.mxu0 0
    %1106 = vmatpush1.bf16.msra.mxu0 0
    %1107 = vmatprep.subr.bf16.mxu0 0
    %1108 = vmatpush1.bf16.msra.mxu0 0
    %1109 = vmatprep.subr.bf16.mxu0 0
    %1110 = vmatpush1.bf16.msra.mxu0 0
    %1111 = vmatprep.subr.bf16.mxu0 0
    %1112 = vmatpush1.bf16.msra.mxu0 0
    %1113 = vmatprep.subr.bf16.mxu0 0
    %1114 = vmatpush1.bf16.msra.mxu0 0
    %1115 = vmatprep.subr.bf16.mxu0 0
    %1116 = vmatpush1.bf16.msra.mxu0 0
    %1117 = vmatprep.subr.bf16.mxu0 0
    %1118 = vmatpush1.bf16.msra.mxu0 0
    %1119 = vmatprep.subr.bf16.mxu0 0
    %1120 = vmatpush1.bf16.msra.mxu0 0
    %1121 = vmatprep.subr.bf16.mxu0 0
    %1122 = vmatpush1.bf16.msra.mxu0 0
    %1123 = vmatprep.subr.bf16.mxu0 0
    %1124 = vmatpush1.bf16.msra.mxu0 0
    %1125 = vmatprep.mubr.bf16.mxu0 0
    %1126 = vmatmul.mubr.bf16.gmra.mrb[0].mxu0 %v1091
    %v1127 = vpop.f32.mrb[0].mxu0
    %v1128 = vadd.f32 %v1082, %v1127
    %v1129 = vpop.f32.mrb[0].mxu0
    %v1130 = vpop.f32.mrb[0].mxu0
    %v1131 = vpop.f32.mrb[0].mxu0
    %1132 = vdwg.mxu0
    %v1133 = vadd.f32 %v1128, %v161
    %v1134 = vxor.u32 %v1133, 2147483648
    %v1135 = vmul.f32 %v1134, 1.442695
    %v1136 = vpow.pop %v1135
    %v1137 = vadd.f32 %v1136, 1.0
    %v1138 = vrcp.pop %v1137
    %v1139 = vmul.f32 1.0, %v1138
    %v1140 = vtanh.pop %v1133
    %v1141 = vmul.f32 %v1139, %v957
    %1143 = vrot.lane.b32.xlu0 %v1140, 64
    %v1144 = vpop.permute.xlu0 %1143
    %v1146 = vmul.f32 %v1139, %v1144
    %1148 = vrot.lane.b32.xlu0 %v1146, 32
    %v1149 = vpop.permute.xlu0 %1148
    %v1151 = vadd.f32 %v1141, %v1149
    %v1152 = vtanh.pop %v1151
    %1154 = vrot.lane.b32.xlu0 %v1152, 64
    %v1155 = vpop.permute.xlu0 %1154
    %v1157 = vmul.f32 %v1139, %v1155
    %1159 = vset.pattern.permute.xlu0 0
    %1160 = vperm.xlu0 %1159, %v972
    %v1161 = vpop.permute.xlu0 %1160
    %v1163 = vmul.f32 %v1157, %v1161
    %v1164 = vadd.f32 %v970, %v1163
    %s1165 = scalar_lea.vmem %s1, 40
    %v1166 = vld [vmem:[%s1165] sm:$0xff]
    %v1167 = vpack.c.bf16 %v1157, %v1157
    %v1168 = vld [vmem:[#allocation2 + $0x28] sm:$0xff]
    %1169 = vmatprep.subr.bf16.mxu0 0
    %1170 = vmatpush1.bf16.msra.mxu0 %v173
    %1171 = vmatprep.subr.bf16.mxu0 0
    %1172 = vmatpush1.bf16.msra.mxu0 %v174
    %1173 = vmatprep.subr.bf16.mxu0 0
    %1174 = vmatpush1.bf16.msra.mxu0 0
    %1175 = vmatprep.subr.bf16.mxu0 0
    %1176 = vmatpush1.bf16.msra.mxu0 0
    %1177 = vmatprep.subr.bf16.mxu0 0
    %1178 = vmatpush1.bf16.msra.mxu0 0
    %1179 = vmatprep.subr.bf16.mxu0 0
    %1180 = vmatpush1.bf16.msra.mxu0 0
    %1181 = vmatprep.subr.bf16.mxu0 0
    %1182 = vmatpush1.bf16.msra.mxu0 0
    %1183 = vmatprep.subr.bf16.mxu0 0
    %1184 = vmatpush1.bf16.msra.mxu0 0
    %1185 = vmatprep.subr.bf16.mxu0 0
    %1186 = vmatpush1.bf16.msra.mxu0 0
    %1187 = vmatprep.subr.bf16.mxu0 0
    %1188 = vmatpush1.bf16.msra.mxu0 0
    %1189 = vmatprep.subr.bf16.mxu0 0
    %1190 = vmatpush1.bf16.msra.mxu0 0
    %1191 = vmatprep.subr.bf16.mxu0 0
    %1192 = vmatpush1.bf16.msra.mxu0 0
    %1193 = vmatprep.subr.bf16.mxu0 0
    %1194 = vmatpush1.bf16.msra.mxu0 0
    %1195 = vmatprep.subr.bf16.mxu0 0
    %1196 = vmatpush1.bf16.msra.mxu0 0
    %1197 = vmatprep.subr.bf16.mxu0 0
    %1198 = vmatpush1.bf16.msra.mxu0 0
    %1199 = vmatprep.subr.bf16.mxu0 0
    %1200 = vmatpush1.bf16.msra.mxu0 0
    %1201 = vmatprep.mubr.bf16.mxu0 0
    %1202 = vmatmul.mubr.bf16.gmra.mrb[0].mxu0 %v1045
    %v1203 = vpop.f32.mrb[0].mxu0
    %v1204 = vadd.f32 0.0, %v1203
    %v1205 = vpop.f32.mrb[0].mxu0
    %v1206 = vpop.f32.mrb[0].mxu0
    %v1207 = vpop.f32.mrb[0].mxu0
    %1208 = vdwg.mxu0
    %v1209 = vadd.f32 %v1168, %v1204
    %v1210 = vxor.u32 %v1209, 2147483648
    %v1211 = vmul.f32 %v1210, 1.442695
    %v1212 = vpow.pop %v1211
    %v1213 = vadd.f32 %v1212, 1.0
    %v1214 = vrcp.pop %v1213
    %v1215 = vmul.f32 1.0, %v1214
    %v1216 = vtanh.pop %v1209
    %v1217 = vmul.f32 %v1215, %v1033
    %1219 = vrot.lane.b32.xlu0 %v1216, 64
    %v1220 = vpop.permute.xlu0 %1219
    %v1222 = vmul.f32 %v1215, %v1220
    %1224 = vrot.lane.b32.xlu0 %v1222, 32
    %v1225 = vpop.permute.xlu0 %1224
    %v1227 = vadd.f32 %v1217, %v1225
    %v1228 = vtanh.pop %v1227
    %1230 = vrot.lane.b32.xlu0 %v1228, 64
    %v1231 = vpop.permute.xlu0 %1230
    %v1233 = vmul.f32 %v1215, %v1231
    %v1234 = vpack.c.bf16 %v1233, %v1233
    %1236 = vrot.lane.b32.xlu0 %v1234, 32
    %v1237 = vpop.permute.xlu0 %1236
    %v1239 = vsel %vm177, %v1237, 0
    %1241 = vmatprep.subr.bf16.mxu0 0
    %1242 = vmatpush1.bf16.msra.mxu0 %v258
    %1243 = vmatprep.subr.bf16.mxu0 0
    %1244 = vmatpush1.bf16.msra.mxu0 %v259
    %1245 = vmatprep.subr.bf16.mxu0 0
    %1246 = vmatpush1.bf16.msra.mxu0 0
    %1247 = vmatprep.subr.bf16.mxu0 0
    %1248 = vmatpush1.bf16.msra.mxu0 0
    %1249 = vmatprep.subr.bf16.mxu0 0
    %1250 = vmatpush1.bf16.msra.mxu0 0
    %1251 = vmatprep.subr.bf16.mxu0 0
    %1252 = vmatpush1.bf16.msra.mxu0 0
    %1253 = vmatprep.subr.bf16.mxu0 0
    %1254 = vmatpush1.bf16.msra.mxu0 0
    %1255 = vmatprep.subr.bf16.mxu0 0
    %1256 = vmatpush1.bf16.msra.mxu0 0
    %1257 = vmatprep.subr.bf16.mxu0 0
    %1258 = vmatpush1.bf16.msra.mxu0 0
    %1259 = vmatprep.subr.bf16.mxu0 0
    %1260 = vmatpush1.bf16.msra.mxu0 0
    %1261 = vmatprep.subr.bf16.mxu0 0
    %1262 = vmatpush1.bf16.msra.mxu0 0
    %1263 = vmatprep.subr.bf16.mxu0 0
    %1264 = vmatpush1.bf16.msra.mxu0 0
    %1265 = vmatprep.subr.bf16.mxu0 0
    %1266 = vmatpush1.bf16.msra.mxu0 0
    %1267 = vmatprep.subr.bf16.mxu0 0
    %1268 = vmatpush1.bf16.msra.mxu0 0
    %1269 = vmatprep.subr.bf16.mxu0 0
    %1270 = vmatpush1.bf16.msra.mxu0 0
    %1271 = vmatprep.subr.bf16.mxu0 0
    %1272 = vmatpush1.bf16.msra.mxu0 0
    %1273 = vmatprep.mubr.bf16.mxu0 0
    %1274 = vmatmul.mubr.bf16.gmra.mrb[0].mxu0 %v1239
    %v1275 = vpop.f32.mrb[0].mxu0
    %v1276 = vadd.f32 0.0, %v1275
    %v1277 = vpop.f32.mrb[0].mxu0
    %v1278 = vpop.f32.mrb[0].mxu0
    %v1279 = vpop.f32.mrb[0].mxu0
    %1280 = vdwg.mxu0
    %1282 = vrot.lane.b32.xlu0 %v1167, 32
    %v1283 = vpop.permute.xlu0 %1282
    %v1285 = vsel %vm177, %v1283, 0
    %1287 = vmatprep.subr.bf16.mxu0 0
    %1288 = vmatpush1.bf16.msra.mxu0 %v313
    %1289 = vmatprep.subr.bf16.mxu0 0
    %1290 = vmatpush1.bf16.msra.mxu0 %v314
    %1291 = vmatprep.subr.bf16.mxu0 0
    %1292 = vmatpush1.bf16.msra.mxu0 0
    %1293 = vmatprep.subr.bf16.mxu0 0
    %1294 = vmatpush1.bf16.msra.mxu0 0
    %1295 = vmatprep.subr.bf16.mxu0 0
    %1296 = vmatpush1.bf16.msra.mxu0 0
    %1297 = vmatprep.subr.bf16.mxu0 0
    %1298 = vmatpush1.bf16.msra.mxu0 0
    %1299 = vmatprep.subr.bf16.mxu0 0
    %1300 = vmatpush1.bf16.msra.mxu0 0
    %1301 = vmatprep.subr.bf16.mxu0 0
    %1302 = vmatpush1.bf16.msra.mxu0 0
    %1303 = vmatprep.subr.bf16.mxu0 0
    %1304 = vmatpush1.bf16.msra.mxu0 0
    %1305 = vmatprep.subr.bf16.mxu0 0
    %1306 = vmatpush1.bf16.msra.mxu0 0
    %1307 = vmatprep.subr.bf16.mxu0 0
    %1308 = vmatpush1.bf16.msra.mxu0 0
    %1309 = vmatprep.subr.bf16.mxu0 0
    %1310 = vmatpush1.bf16.msra.mxu0 0
    %1311 = vmatprep.subr.bf16.mxu0 0
    %1312 = vmatpush1.bf16.msra.mxu0 0
    %1313 = vmatprep.subr.bf16.mxu0 0
    %1314 = vmatpush1.bf16.msra.mxu0 0
    %1315 = vmatprep.subr.bf16.mxu0 0
    %1316 = vmatpush1.bf16.msra.mxu0 0
    %1317 = vmatprep.subr.bf16.mxu0 0
    %1318 = vmatpush1.bf16.msra.mxu0 0
    %1319 = vmatprep.mubr.bf16.mxu0 0
    %1320 = vmatmul.mubr.bf16.gmra.mrb[0].mxu0 %v1285
    %v1321 = vpop.f32.mrb[0].mxu0
    %v1322 = vadd.f32 %v1276, %v1321
    %v1323 = vpop.f32.mrb[0].mxu0
    %v1324 = vpop.f32.mrb[0].mxu0
    %v1325 = vpop.f32.mrb[0].mxu0
    %1326 = vdwg.mxu0
    %v1327 = vadd.f32 %v1322, %v161
    %v1328 = vxor.u32 %v1327, 2147483648
    %v1329 = vmul.f32 %v1328, 1.442695
    %v1330 = vpow.pop %v1329
    %v1331 = vadd.f32 %v1330, 1.0
    %v1332 = vrcp.pop %v1331
    %v1333 = vmul.f32 1.0, %v1332
    %v1334 = vtanh.pop %v1327
    %v1335 = vmul.f32 %v1333, %v1151
    %1337 = vrot.lane.b32.xlu0 %v1334, 64
    %v1338 = vpop.permute.xlu0 %1337
    %v1340 = vmul.f32 %v1333, %v1338
    %1342 = vrot.lane.b32.xlu0 %v1340, 32
    %v1343 = vpop.permute.xlu0 %1342
    %v1345 = vadd.f32 %v1335, %v1343
    %v1346 = vtanh.pop %v1345
    %1348 = vrot.lane.b32.xlu0 %v1346, 64
    %v1349 = vpop.permute.xlu0 %1348
    %v1351 = vmul.f32 %v1333, %v1349
    %1353 = vset.pattern.permute.xlu0 0
    %1354 = vperm.xlu0 %1353, %v1166
    %v1355 = vpop.permute.xlu0 %1354
    %v1357 = vmul.f32 %v1351, %v1355
    %v1358 = vadd.f32 %v1164, %v1357
    %s1359 = scalar_lea.vmem %s1, 48
    %v1360 = vld [vmem:[%s1359] sm:$0xff]
    %v1361 = vpack.c.bf16 %v1351, %v1351
    %v1362 = vld [vmem:[#allocation2 + $0x30] sm:$0xff]
    %1363 = vmatprep.subr.bf16.mxu0 0
    %1364 = vmatpush1.bf16.msra.mxu0 %v173
    %1365 = vmatprep.subr.bf16.mxu0 0
    %1366 = vmatpush1.bf16.msra.mxu0 %v174
    %1367 = vmatprep.subr.bf16.mxu0 0
    %1368 = vmatpush1.bf16.msra.mxu0 0
    %1369 = vmatprep.subr.bf16.mxu0 0
    %1370 = vmatpush1.bf16.msra.mxu0 0
    %1371 = vmatprep.subr.bf16.mxu0 0
    %1372 = vmatpush1.bf16.msra.mxu0 0
    %1373 = vmatprep.subr.bf16.mxu0 0
    %1374 = vmatpush1.bf16.msra.mxu0 0
    %1375 = vmatprep.subr.bf16.mxu0 0
    %1376 = vmatpush1.bf16.msra.mxu0 0
    %1377 = vmatprep.subr.bf16.mxu0 0
    %1378 = vmatpush1.bf16.msra.mxu0 0
    %1379 = vmatprep.subr.bf16.mxu0 0
    %1380 = vmatpush1.bf16.msra.mxu0 0
    %1381 = vmatprep.subr.bf16.mxu0 0
    %1382 = vmatpush1.bf16.msra.mxu0 0
    %1383 = vmatprep.subr.bf16.mxu0 0
    %1384 = vmatpush1.bf16.msra.mxu0 0
    %1385 = vmatprep.subr.bf16.mxu0 0
    %1386 = vmatpush1.bf16.msra.mxu0 0
    %1387 = vmatprep.subr.bf16.mxu0 0
    %1388 = vmatpush1.bf16.msra.mxu0 0
    %1389 = vmatprep.subr.bf16.mxu0 0
    %1390 = vmatpush1.bf16.msra.mxu0 0
    %1391 = vmatprep.subr.bf16.mxu0 0
    %1392 = vmatpush1.bf16.msra.mxu0 0
    %1393 = vmatprep.subr.bf16.mxu0 0
    %1394 = vmatpush1.bf16.msra.mxu0 0
    %1395 = vmatprep.mubr.bf16.mxu0 0
    %1396 = vmatmul.mubr.bf16.gmra.mrb[0].mxu0 %v1239
    %v1397 = vpop.f32.mrb[0].mxu0
    %v1398 = vadd.f32 0.0, %v1397
    %v1399 = vpop.f32.mrb[0].mxu0
    %v1400 = vpop.f32.mrb[0].mxu0
    %v1401 = vpop.f32.mrb[0].mxu0
    %1402 = vdwg.mxu0
    %v1403 = vadd.f32 %v1362, %v1398
    %v1404 = vxor.u32 %v1403, 2147483648
    %v1405 = vmul.f32 %v1404, 1.442695
    %v1406 = vpow.pop %v1405
    %v1407 = vadd.f32 %v1406, 1.0
    %v1408 = vrcp.pop %v1407
    %v1409 = vmul.f32 1.0, %v1408
    %v1410 = vtanh.pop %v1403
    %v1411 = vmul.f32 %v1409, %v1227
    %1413 = vrot.lane.b32.xlu0 %v1410, 64
    %v1414 = vpop.permute.xlu0 %1413
    %v1416 = vmul.f32 %v1409, %v1414
    %1418 = vrot.lane.b32.xlu0 %v1416, 32
    %v1419 = vpop.permute.xlu0 %1418
    %v1421 = vadd.f32 %v1411, %v1419
    %v1422 = vtanh.pop %v1421
    %1424 = vrot.lane.b32.xlu0 %v1422, 64
    %v1425 = vpop.permute.xlu0 %1424
    %v1427 = vmul.f32 %v1409, %v1425
    %v1428 = vpack.c.bf16 %v1427, %v1427
    %1430 = vrot.lane.b32.xlu0 %v1428, 32
    %v1431 = vpop.permute.xlu0 %1430
    %v1433 = vsel %vm177, %v1431, 0
    %1435 = vmatprep.subr.bf16.mxu0 0
    %1436 = vmatpush1.bf16.msra.mxu0 %v258
    %1437 = vmatprep.subr.bf16.mxu0 0
    %1438 = vmatpush1.bf16.msra.mxu0 %v259
    %1439 = vmatprep.subr.bf16.mxu0 0
    %1440 = vmatpush1.bf16.msra.mxu0 0
    %1441 = vmatprep.subr.bf16.mxu0 0
    %1442 = vmatpush1.bf16.msra.mxu0 0
    %1443 = vmatprep.subr.bf16.mxu0 0
    %1444 = vmatpush1.bf16.msra.mxu0 0
    %1445 = vmatprep.subr.bf16.mxu0 0
    %1446 = vmatpush1.bf16.msra.mxu0 0
    %1447 = vmatprep.subr.bf16.mxu0 0
    %1448 = vmatpush1.bf16.msra.mxu0 0
    %1449 = vmatprep.subr.bf16.mxu0 0
    %1450 = vmatpush1.bf16.msra.mxu0 0
    %1451 = vmatprep.subr.bf16.mxu0 0
    %1452 = vmatpush1.bf16.msra.mxu0 0
    %1453 = vmatprep.subr.bf16.mxu0 0
    %1454 = vmatpush1.bf16.msra.mxu0 0
    %1455 = vmatprep.subr.bf16.mxu0 0
    %1456 = vmatpush1.bf16.msra.mxu0 0
    %1457 = vmatprep.subr.bf16.mxu0 0
    %1458 = vmatpush1.bf16.msra.mxu0 0
    %1459 = vmatprep.subr.bf16.mxu0 0
    %1460 = vmatpush1.bf16.msra.mxu0 0
    %1461 = vmatprep.subr.bf16.mxu0 0
    %1462 = vmatpush1.bf16.msra.mxu0 0
    %1463 = vmatprep.subr.bf16.mxu0 0
    %1464 = vmatpush1.bf16.msra.mxu0 0
    %1465 = vmatprep.subr.bf16.mxu0 0
    %1466 = vmatpush1.bf16.msra.mxu0 0
    %1467 = vmatprep.mubr.bf16.mxu0 0
    %1468 = vmatmul.mubr.bf16.gmra.mrb[0].mxu0 %v1433
    %v1469 = vpop.f32.mrb[0].mxu0
    %v1470 = vadd.f32 0.0, %v1469
    %v1471 = vpop.f32.mrb[0].mxu0
    %v1472 = vpop.f32.mrb[0].mxu0
    %v1473 = vpop.f32.mrb[0].mxu0
    %1474 = vdwg.mxu0
    %1476 = vrot.lane.b32.xlu0 %v1361, 32
    %v1477 = vpop.permute.xlu0 %1476
    %v1479 = vsel %vm177, %v1477, 0
    %1481 = vmatprep.subr.bf16.mxu0 0
    %1482 = vmatpush1.bf16.msra.mxu0 %v313
    %1483 = vmatprep.subr.bf16.mxu0 0
    %1484 = vmatpush1.bf16.msra.mxu0 %v314
    %1485 = vmatprep.subr.bf16.mxu0 0
    %1486 = vmatpush1.bf16.msra.mxu0 0
    %1487 = vmatprep.subr.bf16.mxu0 0
    %1488 = vmatpush1.bf16.msra.mxu0 0
    %1489 = vmatprep.subr.bf16.mxu0 0
    %1490 = vmatpush1.bf16.msra.mxu0 0
    %1491 = vmatprep.subr.bf16.mxu0 0
    %1492 = vmatpush1.bf16.msra.mxu0 0
    %1493 = vmatprep.subr.bf16.mxu0 0
    %1494 = vmatpush1.bf16.msra.mxu0 0
    %1495 = vmatprep.subr.bf16.mxu0 0
    %1496 = vmatpush1.bf16.msra.mxu0 0
    %1497 = vmatprep.subr.bf16.mxu0 0
    %1498 = vmatpush1.bf16.msra.mxu0 0
    %1499 = vmatprep.subr.bf16.mxu0 0
    %1500 = vmatpush1.bf16.msra.mxu0 0
    %1501 = vmatprep.subr.bf16.mxu0 0
    %1502 = vmatpush1.bf16.msra.mxu0 0
    %1503 = vmatprep.subr.bf16.mxu0 0
    %1504 = vmatpush1.bf16.msra.mxu0 0
    %1505 = vmatprep.subr.bf16.mxu0 0
    %1506 = vmatpush1.bf16.msra.mxu0 0
    %1507 = vmatprep.subr.bf16.mxu0 0
    %1508 = vmatpush1.bf16.msra.mxu0 0
    %1509 = vmatprep.subr.bf16.mxu0 0
    %1510 = vmatpush1.bf16.msra.mxu0 0
    %1511 = vmatprep.subr.bf16.mxu0 0
    %1512 = vmatpush1.bf16.msra.mxu0 0
    %1513 = vmatprep.mubr.bf16.mxu0 0
    %1514 = vmatmul.mubr.bf16.gmra.mrb[0].mxu0 %v1479
    %v1515 = vpop.f32.mrb[0].mxu0
    %v1516 = vadd.f32 %v1470, %v1515
    %v1517 = vpop.f32.mrb[0].mxu0
    %v1518 = vpop.f32.mrb[0].mxu0
    %v1519 = vpop.f32.mrb[0].mxu0
    %1520 = vdwg.mxu0
    %v1521 = vadd.f32 %v1516, %v161
    %v1522 = vxor.u32 %v1521, 2147483648
    %v1523 = vmul.f32 %v1522, 1.442695
    %v1524 = vpow.pop %v1523
    %v1525 = vadd.f32 %v1524, 1.0
    %v1526 = vrcp.pop %v1525
    %v1527 = vmul.f32 1.0, %v1526
    %v1528 = vtanh.pop %v1521
    %v1529 = vmul.f32 %v1527, %v1345
    %1531 = vrot.lane.b32.xlu0 %v1528, 64
    %v1532 = vpop.permute.xlu0 %1531
    %v1534 = vmul.f32 %v1527, %v1532
    %1536 = vrot.lane.b32.xlu0 %v1534, 32
    %v1537 = vpop.permute.xlu0 %1536
    %v1539 = vadd.f32 %v1529, %v1537
    %v1540 = vtanh.pop %v1539
    %1542 = vrot.lane.b32.xlu0 %v1540, 64
    %v1543 = vpop.permute.xlu0 %1542
    %v1545 = vmul.f32 %v1527, %v1543
    %1547 = vset.pattern.permute.xlu0 0
    %1548 = vperm.xlu0 %1547, %v1360
    %v1549 = vpop.permute.xlu0 %1548
    %v1551 = vmul.f32 %v1545, %v1549
    %v1552 = vadd.f32 %v1358, %v1551
    %s1553 = scalar_lea.vmem %s1, 56
    %v1554 = vld [vmem:[%s1553] sm:$0xff]
    %v1555 = vpack.c.bf16 %v1545, %v1545
    %v1556 = vld [vmem:[#allocation2 + $0x38] sm:$0xff]
    %1557 = vmatprep.subr.bf16.mxu0 0
    %1558 = vmatpush1.bf16.msra.mxu0 %v173
    %1559 = vmatprep.subr.bf16.mxu0 0
    %1560 = vmatpush1.bf16.msra.mxu0 %v174
    %1561 = vmatprep.subr.bf16.mxu0 0
    %1562 = vmatpush1.bf16.msra.mxu0 0
    %1563 = vmatprep.subr.bf16.mxu0 0
    %1564 = vmatpush1.bf16.msra.mxu0 0
    %1565 = vmatprep.subr.bf16.mxu0 0
    %1566 = vmatpush1.bf16.msra.mxu0 0
    %1567 = vmatprep.subr.bf16.mxu0 0
    %1568 = vmatpush1.bf16.msra.mxu0 0
    %1569 = vmatprep.subr.bf16.mxu0 0
    %1570 = vmatpush1.bf16.msra.mxu0 0
    %1571 = vmatprep.subr.bf16.mxu0 0
    %1572 = vmatpush1.bf16.msra.mxu0 0
    %1573 = vmatprep.subr.bf16.mxu0 0
    %1574 = vmatpush1.bf16.msra.mxu0 0
    %1575 = vmatprep.subr.bf16.mxu0 0
    %1576 = vmatpush1.bf16.msra.mxu0 0
    %1577 = vmatprep.subr.bf16.mxu0 0
    %1578 = vmatpush1.bf16.msra.mxu0 0
    %1579 = vmatprep.subr.bf16.mxu0 0
    %1580 = vmatpush1.bf16.msra.mxu0 0
    %1581 = vmatprep.subr.bf16.mxu0 0
    %1582 = vmatpush1.bf16.msra.mxu0 0
    %1583 = vmatprep.subr.bf16.mxu0 0
    %1584 = vmatpush1.bf16.msra.mxu0 0
    %1585 = vmatprep.subr.bf16.mxu0 0
    %1586 = vmatpush1.bf16.msra.mxu0 0
    %1587 = vmatprep.subr.bf16.mxu0 0
    %1588 = vmatpush1.bf16.msra.mxu0 0
    %1589 = vmatprep.mubr.bf16.mxu0 0
    %1590 = vmatmul.mubr.bf16.gmra.mrb[0].mxu0 %v1433
    %v1591 = vpop.f32.mrb[0].mxu0
    %v1592 = vadd.f32 0.0, %v1591
    %v1593 = vpop.f32.mrb[0].mxu0
    %v1594 = vpop.f32.mrb[0].mxu0
    %v1595 = vpop.f32.mrb[0].mxu0
    %1596 = vdwg.mxu0
    %v1597 = vadd.f32 %v1556, %v1592
    %v1598 = vxor.u32 %v1597, 2147483648
    %v1599 = vmul.f32 %v1598, 1.442695
    %v1600 = vpow.pop %v1599
    %v1601 = vadd.f32 %v1600, 1.0
    %v1602 = vrcp.pop %v1601
    %v1603 = vmul.f32 1.0, %v1602
    %v1604 = vtanh.pop %v1597
    %v1605 = vmul.f32 %v1603, %v1421
    %1607 = vrot.lane.b32.xlu0 %v1604, 64
    %v1608 = vpop.permute.xlu0 %1607
    %v1610 = vmul.f32 %v1603, %v1608
    %1612 = vrot.lane.b32.xlu0 %v1610, 32
    %v1613 = vpop.permute.xlu0 %1612
    %v1615 = vadd.f32 %v1605, %v1613
    %v1616 = vtanh.pop %v1615
    %1618 = vrot.lane.b32.xlu0 %v1616, 64
    %v1619 = vpop.permute.xlu0 %1618
    %v1621 = vmul.f32 %v1603, %v1619
    %v1622 = vpack.c.bf16 %v1621, %v1621
    %1624 = vrot.lane.b32.xlu0 %v1622, 32
    %v1625 = vpop.permute.xlu0 %1624
    %v1627 = vsel %vm177, %v1625, 0
    %1629 = vmatprep.subr.bf16.mxu0 0
    %1630 = vmatpush1.bf16.msra.mxu0 %v258
    %1631 = vmatprep.subr.bf16.mxu0 0
    %1632 = vmatpush1.bf16.msra.mxu0 %v259
    %1633 = vmatprep.subr.bf16.mxu0 0
    %1634 = vmatpush1.bf16.msra.mxu0 0
    %1635 = vmatprep.subr.bf16.mxu0 0
    %1636 = vmatpush1.bf16.msra.mxu0 0
    %1637 = vmatprep.subr.bf16.mxu0 0
    %1638 = vmatpush1.bf16.msra.mxu0 0
    %1639 = vmatprep.subr.bf16.mxu0 0
    %1640 = vmatpush1.bf16.msra.mxu0 0
    %1641 = vmatprep.subr.bf16.mxu0 0
    %1642 = vmatpush1.bf16.msra.mxu0 0
    %1643 = vmatprep.subr.bf16.mxu0 0
    %1644 = vmatpush1.bf16.msra.mxu0 0
    %1645 = vmatprep.subr.bf16.mxu0 0
    %1646 = vmatpush1.bf16.msra.mxu0 0
    %1647 = vmatprep.subr.bf16.mxu0 0
    %1648 = vmatpush1.bf16.msra.mxu0 0
    %1649 = vmatprep.subr.bf16.mxu0 0
    %1650 = vmatpush1.bf16.msra.mxu0 0
    %1651 = vmatprep.subr.bf16.mxu0 0
    %1652 = vmatpush1.bf16.msra.mxu0 0
    %1653 = vmatprep.subr.bf16.mxu0 0
    %1654 = vmatpush1.bf16.msra.mxu0 0
    %1655 = vmatprep.subr.bf16.mxu0 0
    %1656 = vmatpush1.bf16.msra.mxu0 0
    %1657 = vmatprep.subr.bf16.mxu0 0
    %1658 = vmatpush1.bf16.msra.mxu0 0
    %1659 = vmatprep.subr.bf16.mxu0 0
    %1660 = vmatpush1.bf16.msra.mxu0 0
    %1661 = vmatprep.mubr.bf16.mxu0 0
    %1662 = vmatmul.mubr.bf16.gmra.mrb[0].mxu0 %v1627
    %v1663 = vpop.f32.mrb[0].mxu0
    %v1664 = vadd.f32 0.0, %v1663
    %v1665 = vpop.f32.mrb[0].mxu0
    %v1666 = vpop.f32.mrb[0].mxu0
    %v1667 = vpop.f32.mrb[0].mxu0
    %1668 = vdwg.mxu0
    %1670 = vrot.lane.b32.xlu0 %v1555, 32
    %v1671 = vpop.permute.xlu0 %1670
    %v1673 = vsel %vm177, %v1671, 0
    %1675 = vmatprep.subr.bf16.mxu0 0
    %1676 = vmatpush1.bf16.msra.mxu0 %v313
    %1677 = vmatprep.subr.bf16.mxu0 0
    %1678 = vmatpush1.bf16.msra.mxu0 %v314
    %1679 = vmatprep.subr.bf16.mxu0 0
    %1680 = vmatpush1.bf16.msra.mxu0 0
    %1681 = vmatprep.subr.bf16.mxu0 0
    %1682 = vmatpush1.bf16.msra.mxu0 0
    %1683 = vmatprep.subr.bf16.mxu0 0
    %1684 = vmatpush1.bf16.msra.mxu0 0
    %1685 = vmatprep.subr.bf16.mxu0 0
    %1686 = vmatpush1.bf16.msra.mxu0 0
    %1687 = vmatprep.subr.bf16.mxu0 0
    %1688 = vmatpush1.bf16.msra.mxu0 0
    %1689 = vmatprep.subr.bf16.mxu0 0
    %1690 = vmatpush1.bf16.msra.mxu0 0
    %1691 = vmatprep.subr.bf16.mxu0 0
    %1692 = vmatpush1.bf16.msra.mxu0 0
    %1693 = vmatprep.subr.bf16.mxu0 0
    %1694 = vmatpush1.bf16.msra.mxu0 0
    %1695 = vmatprep.subr.bf16.mxu0 0
    %1696 = vmatpush1.bf16.msra.mxu0 0
    %1697 = vmatprep.subr.bf16.mxu0 0
    %1698 = vmatpush1.bf16.msra.mxu0 0
    %1699 = vmatprep.subr.bf16.mxu0 0
    %1700 = vmatpush1.bf16.msra.mxu0 0
    %1701 = vmatprep.subr.bf16.mxu0 0
    %1702 = vmatpush1.bf16.msra.mxu0 0
    %1703 = vmatprep.subr.bf16.mxu0 0
    %1704 = vmatpush1.bf16.msra.mxu0 0
    %1705 = vmatprep.subr.bf16.mxu0 0
    %1706 = vmatpush1.bf16.msra.mxu0 0
    %1707 = vmatprep.mubr.bf16.mxu0 0
    %1708 = vmatmul.mubr.bf16.gmra.mrb[0].mxu0 %v1673
    %v1709 = vpop.f32.mrb[0].mxu0
    %v1710 = vadd.f32 %v1664, %v1709
    %v1711 = vpop.f32.mrb[0].mxu0
    %v1712 = vpop.f32.mrb[0].mxu0
    %v1713 = vpop.f32.mrb[0].mxu0
    %1714 = vdwg.mxu0
    %v1715 = vadd.f32 %v1710, %v161
    %v1716 = vxor.u32 %v1715, 2147483648
    %v1717 = vmul.f32 %v1716, 1.442695
    %v1718 = vpow.pop %v1717
    %v1719 = vadd.f32 %v1718, 1.0
    %v1720 = vrcp.pop %v1719
    %v1721 = vmul.f32 1.0, %v1720
    %v1722 = vtanh.pop %v1715
    %v1723 = vmul.f32 %v1721, %v1539
    %1725 = vrot.lane.b32.xlu0 %v1722, 64
    %v1726 = vpop.permute.xlu0 %1725
    %v1728 = vmul.f32 %v1721, %v1726
    %1730 = vrot.lane.b32.xlu0 %v1728, 32
    %v1731 = vpop.permute.xlu0 %1730
    %v1733 = vadd.f32 %v1723, %v1731
    %v1734 = vtanh.pop %v1733
    %1736 = vrot.lane.b32.xlu0 %v1734, 64
    %v1737 = vpop.permute.xlu0 %1736
    %v1739 = vmul.f32 %v1721, %v1737
    %1741 = vset.pattern.permute.xlu0 0
    %1742 = vperm.xlu0 %1741, %v1554
    %v1743 = vpop.permute.xlu0 %1742
    %v1745 = vmul.f32 %v1739, %v1743
    %v1746 = vadd.f32 %v1552, %v1745
    %v1747 = vld [vmem:[%s1] sm:$0xff]
    %v1748 = vld [vmem:[%s1 + $0x8] sm:$0xff]
    %v1749 = vld [vmem:[%s1 + $0x10] sm:$0xff]
    %v1750 = vld [vmem:[%s1 + $0x18] sm:$0xff]
    %v1751 = vld [vmem:[%s1 + $0x20] sm:$0xff]
    %v1752 = vld [vmem:[%s1 + $0x28] sm:$0xff]
    %v1753 = vld [vmem:[%s1 + $0x30] sm:$0xff]
    %v1754 = vld [vmem:[%s1 + $0x38] sm:$0xff]
    %vm1755 = vcmask 7168
    %v1756 = vsel %vm1755, %v1747, 0.0
    %v1757 = vsel %vm1755, %v1748, 0.0
    %v1758 = vadd.f32 %v1756, %v1757
    %v1759 = vsel %vm1755, %v1749, 0.0
    %v1760 = vadd.f32 %v1758, %v1759
    %v1761 = vsel %vm1755, %v1750, 0.0
    %v1762 = vadd.f32 %v1760, %v1761
    %v1763 = vsel %vm1755, %v1751, 0.0
    %v1764 = vadd.f32 %v1762, %v1763
    %v1765 = vsel %vm1755, %v1752, 0.0
    %v1766 = vadd.f32 %v1764, %v1765
    %v1767 = vsel %vm1755, %v1753, 0.0
    %v1768 = vadd.f32 %v1766, %v1767
    %v1769 = vsel %vm1755, %v1754, 0.0
    %v1770 = vadd.f32 %v1768, %v1769
    %1772 = vset.pattern.permute.xlu0 0
    %1773 = vperm.xlu0 %1772, %v1770
    %v1774 = vpop.permute.xlu0 %1773
    %v1776 = vrcp.pop %v1774
    %v1777 = vmul.f32 %v1746, %v1776
    %1779 = vrot.lane.b32.xlu0 %v1777, 32
    %v1780 = vpop.permute.xlu0 %1779
    %1782 = vst.msk [vmem:[#allocation3] sm:$0xff] %vm177, %v1780
    // Predicated region
    $region34: #{encoder_lstm_for_road_emb.1} parent=1 // pred_check
      _
    $region35: #{encoder_lstm_for_road_emb.1} parent=1 // pred_check_branch
      %1784 = sbr.rel (0) target = $region37
    $region36: #{encoder_lstm_for_road_emb.1} parent=1 // pred_region
      %s1786 = ssub.s32 128, 128
      %1787 = vsyncadd [#allocation4], %s1786
      %s1789 = sshll.u32 [#allocation3], 4
      %s1790 = int_to_ptr.vmem [resolvable:$true] %s1789
      %1792 = dma.vmem_to_hbm [thread:$0]  %s1790, 128, %s8, [#allocation4]
    $region37: #{encoder_lstm_for_road_emb.1} parent=1 // pred_fallthru
      _
    // Predicated region
    $region38: #{encoder_lstm_for_road_emb.1} parent=1 // pred_check
      _
    $region39: #{encoder_lstm_for_road_emb.1} parent=1 // pred_check_branch
      %1794 = sbr.rel (0) target = $region41
    $region40: #{encoder_lstm_for_road_emb.1} parent=1 // pred_region
      %1795 = dma.done [#allocation4], 128
    $region41: #{encoder_lstm_for_road_emb.1} parent=1 // pred_fallthru
      _
    %1796 = vsyncpa [#allocation4], 1

</llo_original>
